<compile_context>
chip_gen: v7x
topology: tpu7x:2x2x1
jax: 0.10.0
libtpu: 0.0.40
codegen_flags: <defaults>
</compile_context>

<pallas_src>
import jax
import jax.numpy as jnp
from jax import lax
from jax.experimental import pallas as pl
from jax.experimental.pallas import tpu as pltpu

context_size = 2
embed_dim = 10


def cbow_kernel(idx_ref, w1e_ref, b1_ref, w2_ref, b2_ref, o_ref):
    # idx_ref: (TM, C) int32            token ids for this batch tile
    # w1e_ref: (C*V_PAD, H_PAD) f32     emb folded into linear1 (per context slot)
    # b1_ref:  (1, H_PAD) f32
    # w2_ref:  (H_PAD, V_PAD) f32
    # b2_ref:  (1, V_PAD) f32           padded lanes hold -1e30 (log-softmax mask)
    # o_ref:   (TM, V_PAD) f32          lane-dense output block
    tm = o_ref.shape[0]
    v_pad = o_ref.shape[1]
    cv = w1e_ref.shape[0]               # num_ctx * v_pad
    num_ctx = idx_ref.shape[1]

    idx = idx_ref[...]                                            # (TM, C)
    lane = lax.broadcasted_iota(jnp.int32, (tm, cv), 1)           # (TM, C*V_PAD)

    # Concatenated one-hot over all context slots: lane c*V_PAD + idx[:, c]
    # is 1.  VPU compares + adds only; the gather itself rides the MXU below.
    onehot = jnp.zeros((tm, cv), jnp.float32)
    for c in range(num_ctx):                                      # static unroll (4)
        onehot = onehot + (lane == (idx[:, c:c + 1] + c * v_pad)).astype(jnp.float32)

    # Single fused MXU matmul = embedding gather + linear1 (K = C*V_PAD).
    acc = jnp.dot(onehot, w1e_ref[...], preferred_element_type=jnp.float32)
    h = jnp.maximum(acc + b1_ref[...], 0.0)                       # ReLU

    logits = jnp.dot(h, w2_ref[...],
                     preferred_element_type=jnp.float32) + b2_ref[...]

    # Padded vocab lanes carry -1e30 (from the b2 pad): they never win the max
    # and exp() underflows to 0, so the normalizer over the real vocab is exact.
    m = jnp.max(logits, axis=-1, keepdims=True)
    lse = m + jnp.log(jnp.sum(jnp.exp(logits - m), axis=-1, keepdims=True))
    o_ref[...] = logits - lse


def _round_up(x, m):
    return ((x + m - 1) // m) * m


def _choose_tm(bsz):
    """Batch tile: as fat as possible (cap 128 = MXU M dim), multiple of 8,
    but keep >= 2 grid steps when the batch allows so v7x's 2 TCs share work."""
    tm = min(128, _round_up(bsz, 8))
    if bsz > 8:
        tm = min(tm, _round_up((bsz + 1) // 2, 8))
    return max(tm, 8)


def prepare_params(emb_table, w1, b1, w2, b2):
    """One-time weight prep (hoisted out of the hot path): fold the embedding
    table into linear1 and pad everything to clean (8, 128) hardware tiles."""
    vocab, edim = emb_table.shape
    in1, hidden = w1.shape
    num_ctx = in1 // edim

    v_pad = _round_up(vocab, 128)
    h_pad = _round_up(hidden, 128)

    # Fold in f32 / HIGHEST so the implicit row-gather stays exact.
    w1_c = w1.reshape(num_ctx, edim, hidden)                      # (C, E, H)
    w1e = jnp.einsum("ve,ceh->cvh", emb_table, w1_c,
                     precision=lax.Precision.HIGHEST)             # (C, V, H)
    w1e_p = (jnp.zeros((num_ctx, v_pad, h_pad), jnp.float32)
             .at[:, :vocab, :hidden].set(w1e)
             .reshape(num_ctx * v_pad, h_pad))

    b1_p = jnp.zeros((1, h_pad), jnp.float32).at[:, :hidden].set(b1)
    w2_p = jnp.zeros((h_pad, v_pad), jnp.float32).at[:hidden, :vocab].set(w2)
    # -1e30 in padded bias lanes masks the padded logits out of log_softmax.
    b2_p = jnp.full((1, v_pad), jnp.float32(-1e30)).at[:, :vocab].set(b2)

    return {
        "w1e": w1e_p, "b1": b1_p, "w2": w2_p, "b2": b2_p,
        "vocab": vocab, "num_ctx": num_ctx, "v_pad": v_pad, "h_pad": h_pad,
    }


def cbow_forward(indices, params, *, tm=None):
    """Batched CBOW forward.

    indices: (B, 2*context_size) int32 token ids, or (2*context_size,) for a
             single window (the PyTorch module's forward signature).
    params:  output of prepare_params().
    Returns (B, vocab) (or (1, vocab)) log-probabilities.
    """
    single = indices.ndim == 1
    if single:
        indices = indices[None, :]
    indices = indices.astype(jnp.int32)
    bsz, num_ctx = indices.shape
    assert num_ctx == params["num_ctx"]

    vocab = params["vocab"]
    v_pad = params["v_pad"]
    h_pad = params["h_pad"]
    cv = num_ctx * v_pad

    if tm is None:
        tm = _choose_tm(bsz)
    b_pad = _round_up(bsz, tm)

    # Only the tiny index padding lives in the hot path.
    idx_p = jnp.zeros((b_pad, num_ctx), jnp.int32).at[:bsz].set(indices)

    grid = (b_pad // tm,)
    flops = 2 * b_pad * (cv * h_pad + h_pad * v_pad)
    bytes_accessed = 4 * (idx_p.size + params["w1e"].size + params["b1"].size
                          + params["w2"].size + params["b2"].size
                          + b_pad * v_pad)

    out = pl.pallas_call(
        cbow_kernel,
        out_shape=jax.ShapeDtypeStruct((b_pad, v_pad), jnp.float32),
        grid=grid,
        in_specs=[
            pl.BlockSpec((tm, num_ctx), lambda i: (i, 0)),        # ids (per tile)
            pl.BlockSpec((cv, h_pad), lambda i: (0, 0)),          # W1e (resident)
            pl.BlockSpec((1, h_pad), lambda i: (0, 0)),           # b1
            pl.BlockSpec((h_pad, v_pad), lambda i: (0, 0)),       # W2
            pl.BlockSpec((1, v_pad), lambda i: (0, 0)),           # b2 (masked pad)
        ],
        out_specs=pl.BlockSpec((tm, v_pad), lambda i: (i, 0)),
        compiler_params=pltpu.CompilerParams(
            dimension_semantics=("parallel",)),
        cost_estimate=pl.CostEstimate(
            flops=int(flops),
            transcendentals=int(b_pad * v_pad + b_pad),
            bytes_accessed=int(bytes_accessed)),
    )(idx_p, params["w1e"], params["b1"], params["w2"], params["b2"])

    return out[:bsz, :vocab]


def init_params(key, vocab_num, embed_dim, context_size):
    k_emb, k_w1, k_b1, k_w2, k_b2 = jax.random.split(key, 5)
    in1 = 2 * context_size * embed_dim
    emb_table = jax.random.normal(k_emb, (vocab_num, embed_dim), jnp.float32)
    # nn.Linear(in1, 128): weight (128, in1) -> stored transposed (in1, 128)
    w1 = jax.random.normal(k_w1, (in1, 128), jnp.float32) * (1.0 / jnp.sqrt(in1))
    b1 = jax.random.normal(k_b1, (1, 128), jnp.float32) * 0.01
    # nn.Linear(128, vocab): weight (vocab, 128) -> stored transposed (128, vocab)
    w2 = jax.random.normal(k_w2, (128, vocab_num), jnp.float32) * (1.0 / jnp.sqrt(128.0))
    b2 = jax.random.normal(k_b2, (1, vocab_num), jnp.float32) * 0.01
    return emb_table, w1, b1, w2, b2


if __name__ == "__main__":
    vocab_num = 50
    batch = 256  # -> tm=128 (full MXU M dim), grid of 2 tiles (both TCs on v7x)

    key = jax.random.PRNGKey(0)
    k_params, k_idx = jax.random.split(key)
    emb_table, w1, b1, w2, b2 = init_params(k_params, vocab_num, embed_dim, context_size)
    indices = jax.random.randint(
        k_idx, (batch, 2 * context_size), 0, vocab_num, dtype=jnp.int32)

    # One-time weight prep (fold + pad) -- hoisted out of the hot path.
    params = prepare_params(emb_table, w1, b1, w2, b2)

    log_probs = cbow_forward(indices, params)
    log_probs = jax.block_until_ready(log_probs)

    # Pure-JAX reference (same math as the PyTorch module forward, per row),
    # computed in HIGHEST precision.  The kernel uses default MXU precision
    # (bf16 passes, f32 accumulation), so allow a small absolute tolerance.
    x_ref = emb_table[indices].reshape(batch, -1)
    h_ref = jnp.maximum(
        jnp.dot(x_ref, w1, precision=lax.Precision.HIGHEST) + b1, 0.0)
    logits_ref = jnp.dot(h_ref, w2, precision=lax.Precision.HIGHEST) + b2
    ref = jax.nn.log_softmax(logits_ref, axis=1)

    assert log_probs.shape == (batch, vocab_num)
    assert jnp.allclose(log_probs, ref, atol=2e-2, rtol=2e-3), (
        float(jnp.max(jnp.abs(log_probs - ref))))

    # Single-window path keeps the original module's (1, vocab) semantics.
    single = cbow_forward(indices[0], params)
    single = jax.block_until_ready(single)
    assert single.shape == (1, vocab_num)
    assert jnp.allclose(single, ref[0:1], atol=2e-2, rtol=2e-3)

    print("KERNEL_OK")
</pallas_src>

<mosaic_0001>
module attributes {stable_mosaic.version = 11 : i64} {
  func.func @cbow_kernel(%arg0: i32, %arg1: memref<128x4xi32, #tpu.memory_space<vmem>>, %arg2: memref<512x128xf32, #tpu.memory_space<vmem>>, %arg3: memref<1x128xf32, #tpu.memory_space<vmem>>, %arg4: memref<128x128xf32, #tpu.memory_space<vmem>>, %arg5: memref<1x128xf32, #tpu.memory_space<vmem>>, %arg6: memref<128x128xf32, #tpu.memory_space<vmem>>) attributes {dimension_semantics = [#tpu.dimension_semantics<parallel>], iteration_bounds = array<i64: 2>, scalar_prefetch = 0 : i64, scratch_operands = 0 : i64, tpu.core_type = #tpu.core_type<tc>, window_params = [{transform_indices = @transform_0, window_bounds = array<i64: 128, 4>}, {pipeline_mode = #tpu.pipeline_mode<synchronous>, transform_indices = @transform_1, window_bounds = array<i64: 512, 128>}, {pipeline_mode = #tpu.pipeline_mode<synchronous>, transform_indices = @transform_2, window_bounds = array<i64: 1, 128>}, {pipeline_mode = #tpu.pipeline_mode<synchronous>, transform_indices = @transform_3, window_bounds = array<i64: 128, 128>}, {pipeline_mode = #tpu.pipeline_mode<synchronous>, transform_indices = @transform_4, window_bounds = array<i64: 1, 128>}, {transform_indices = @transform_5, window_bounds = array<i64: 128, 128>}]} {
    %c0 = arith.constant 0 : index
    %c0_0 = arith.constant 0 : index
    %0 = vector.load %arg1[%c0, %c0_0] : memref<128x4xi32, #tpu.memory_space<vmem>>, vector<128x4xi32>
    %1 = tpu.iota {dimensions = array<i32: 1>} : vector<128x512xi32>
    %cst = arith.constant 0.000000e+00 : f32
    %2 = vector.broadcast %cst : f32 to vector<128x512xf32>
    %3 = vector.extract_strided_slice %0 {offsets = [0, 0], sizes = [128, 1], strides = [1, 1]} : vector<128x4xi32> to vector<128x1xi32>
    %c0_i32 = arith.constant 0 : i32
    %4 = vector.broadcast %c0_i32 : i32 to vector<128x1xi32>
    %5 = arith.addi %3, %4 : vector<128x1xi32>
    %6 = vector.broadcast %5 : vector<128x1xi32> to vector<128x512xi32>
    %7 = arith.cmpi eq, %1, %6 : vector<128x512xi32>
    %8 = arith.extui %7 : vector<128x512xi1> to vector<128x512xi32>
    %9 = arith.sitofp %8 : vector<128x512xi32> to vector<128x512xf32>
    %10 = arith.addf %2, %9 : vector<128x512xf32>
    %11 = vector.extract_strided_slice %0 {offsets = [0, 1], sizes = [128, 1], strides = [1, 1]} : vector<128x4xi32> to vector<128x1xi32>
    %c128_i32 = arith.constant 128 : i32
    %12 = vector.broadcast %c128_i32 : i32 to vector<128x1xi32>
    %13 = arith.addi %11, %12 : vector<128x1xi32>
    %14 = vector.broadcast %13 : vector<128x1xi32> to vector<128x512xi32>
    %15 = arith.cmpi eq, %1, %14 : vector<128x512xi32>
    %16 = arith.extui %15 : vector<128x512xi1> to vector<128x512xi32>
    %17 = arith.sitofp %16 : vector<128x512xi32> to vector<128x512xf32>
    %18 = arith.addf %10, %17 : vector<128x512xf32>
    %19 = vector.extract_strided_slice %0 {offsets = [0, 2], sizes = [128, 1], strides = [1, 1]} : vector<128x4xi32> to vector<128x1xi32>
    %c256_i32 = arith.constant 256 : i32
    %20 = vector.broadcast %c256_i32 : i32 to vector<128x1xi32>
    %21 = arith.addi %19, %20 : vector<128x1xi32>
    %22 = vector.broadcast %21 : vector<128x1xi32> to vector<128x512xi32>
    %23 = arith.cmpi eq, %1, %22 : vector<128x512xi32>
    %24 = arith.extui %23 : vector<128x512xi1> to vector<128x512xi32>
    %25 = arith.sitofp %24 : vector<128x512xi32> to vector<128x512xf32>
    %26 = arith.addf %18, %25 : vector<128x512xf32>
    %27 = vector.extract_strided_slice %0 {offsets = [0, 3], sizes = [128, 1], strides = [1, 1]} : vector<128x4xi32> to vector<128x1xi32>
    %c384_i32 = arith.constant 384 : i32
    %28 = vector.broadcast %c384_i32 : i32 to vector<128x1xi32>
    %29 = arith.addi %27, %28 : vector<128x1xi32>
    %30 = vector.broadcast %29 : vector<128x1xi32> to vector<128x512xi32>
    %31 = arith.cmpi eq, %1, %30 : vector<128x512xi32>
    %32 = arith.extui %31 : vector<128x512xi1> to vector<128x512xi32>
    %33 = arith.sitofp %32 : vector<128x512xi32> to vector<128x512xf32>
    %34 = arith.addf %26, %33 : vector<128x512xf32>
    %c0_1 = arith.constant 0 : index
    %c0_2 = arith.constant 0 : index
    %35 = vector.load %arg2[%c0_1, %c0_2] : memref<512x128xf32, #tpu.memory_space<vmem>>, vector<512x128xf32>
    %cst_3 = arith.constant dense<0.000000e+00> : vector<128x128xf32>
    %36 = tpu.matmul %34, %35, %cst_3 {dimension_numbers = #tpu.dot_dimension_numbers<[1], [0], [0], [1], [0, 0, 1, 1], [], []>} : vector<128x512xf32>, vector<512x128xf32>, vector<128x128xf32> -> vector<128x128xf32>
    %c0_4 = arith.constant 0 : index
    %c0_5 = arith.constant 0 : index
    %37 = vector.load %arg3[%c0_4, %c0_5] : memref<1x128xf32, #tpu.memory_space<vmem>>, vector<1x128xf32>
    %38 = vector.broadcast %37 : vector<1x128xf32> to vector<128x128xf32>
    %39 = arith.addf %36, %38 : vector<128x128xf32>
    %cst_6 = arith.constant 0.000000e+00 : f32
    %40 = vector.broadcast %cst_6 : f32 to vector<128x128xf32>
    %41 = arith.maximumf %39, %40 : vector<128x128xf32>
    %c0_7 = arith.constant 0 : index
    %c0_8 = arith.constant 0 : index
    %42 = vector.load %arg4[%c0_7, %c0_8] : memref<128x128xf32, #tpu.memory_space<vmem>>, vector<128x128xf32>
    %cst_9 = arith.constant dense<0.000000e+00> : vector<128x128xf32>
    %43 = tpu.matmul %41, %42, %cst_9 {dimension_numbers = #tpu.dot_dimension_numbers<[1], [0], [0], [1], [0, 0, 1, 1], [], []>} : vector<128x128xf32>, vector<128x128xf32>, vector<128x128xf32> -> vector<128x128xf32>
    %c0_10 = arith.constant 0 : index
    %c0_11 = arith.constant 0 : index
    %44 = vector.load %arg5[%c0_10, %c0_11] : memref<1x128xf32, #tpu.memory_space<vmem>>, vector<1x128xf32>
    %45 = vector.broadcast %44 : vector<1x128xf32> to vector<128x128xf32>
    %46 = arith.addf %43, %45 : vector<128x128xf32>
    %cst_12 = arith.constant dense<0xFF800000> : vector<128xf32>
    %47 = vector.multi_reduction <maximumf>, %46, %cst_12 [1] : vector<128x128xf32> to vector<128xf32>
    %48 = vector.shape_cast %47 : vector<128xf32> to vector<128x1xf32>
    %49 = vector.broadcast %48 : vector<128x1xf32> to vector<128x128xf32>
    %50 = arith.subf %46, %49 : vector<128x128xf32>
    %51 = math.exp %50 : vector<128x128xf32>
    %cst_13 = arith.constant dense<0.000000e+00> : vector<128xf32>
    %52 = vector.multi_reduction <add>, %51, %cst_13 [1] : vector<128x128xf32> to vector<128xf32>
    %53 = vector.shape_cast %52 : vector<128xf32> to vector<128x1xf32>
    %54 = math.log %53 : vector<128x1xf32>
    %55 = arith.addf %48, %54 : vector<128x1xf32>
    %56 = vector.broadcast %55 : vector<128x1xf32> to vector<128x128xf32>
    %57 = arith.subf %46, %56 : vector<128x128xf32>
    %c0_14 = arith.constant 0 : index
    %c0_15 = arith.constant 0 : index
    %58 = vector.load %arg6[%c0_14, %c0_15] : memref<128x128xf32, #tpu.memory_space<vmem>>, vector<128x128xf32>
    tpu.vector_store %arg6[%c0_14, %c0_15], %57 {strides = array<i32>} : memref<128x128xf32, #tpu.memory_space<vmem>>, vector<128x128xf32>,
    return
  }
  func.func @transform_0(%arg0: i32) -> (i32, i32) {
    %c0_i32 = arith.constant 0 : i32
    %c0_i32_0 = arith.constant 0 : i32
    return %arg0, %c0_i32 : i32, i32
  }
  func.func @transform_1(%arg0: i32) -> (i32, i32) {
    %c0_i32 = arith.constant 0 : i32
    %c0_i32_0 = arith.constant 0 : i32
    %c0_i32_1 = arith.constant 0 : i32
    return %c0_i32, %c0_i32_0 : i32, i32
  }
  func.func @transform_2(%arg0: i32) -> (i32, i32) {
    %c0_i32 = arith.constant 0 : i32
    %c0_i32_0 = arith.constant 0 : i32
    %c0_i32_1 = arith.constant 0 : i32
    return %c0_i32, %c0_i32_0 : i32, i32
  }
  func.func @transform_3(%arg0: i32) -> (i32, i32) {
    %c0_i32 = arith.constant 0 : i32
    %c0_i32_0 = arith.constant 0 : i32
    %c0_i32_1 = arith.constant 0 : i32
    return %c0_i32, %c0_i32_0 : i32, i32
  }
  func.func @transform_4(%arg0: i32) -> (i32, i32) {
    %c0_i32 = arith.constant 0 : i32
    %c0_i32_0 = arith.constant 0 : i32
    %c0_i32_1 = arith.constant 0 : i32
    return %c0_i32, %c0_i32_0 : i32, i32
  }
  func.func @transform_5(%arg0: i32) -> (i32, i32) {
    %c0_i32 = arith.constant 0 : i32
    %c0_i32_0 = arith.constant 0 : i32
    return %arg0, %c0_i32 : i32, i32
  }
}

</mosaic_0001>

<llo_original>
// kernel: tpu_custom_call.1
$region0: #{tpu_custom_call.1}
  #allocation0 [shape = 'u32[]', space=smem, size = 0x4, offset = 0x4, fixed_abs, tag = 'smem constant byte address 0x4 - core index']
  #allocation1 [shape = 'u32[144,128]{1,0:T(1,128)}', space=vmem, size = 0x12000, scoped, tag = 'internal scratch']
  %s0 = inlined_call_operand.vmem [shape: s32[256,4], index: 0, kind: input, shape index: {}]
  %s1 = inlined_call_operand.hbm [shape: f32[512,128], index: 1, kind: input, shape index: {}]
  %s2 = inlined_call_operand.vmem [shape: f32[1,128], index: 2, kind: input, shape index: {}]
  %s3 = inlined_call_operand.vmem [shape: f32[128,128], index: 3, kind: input, shape index: {}]
  %s4 = inlined_call_operand.vmem [shape: f32[1,128], index: 4, kind: input, shape index: {}]
  %s5 = inlined_call_operand.hbm [shape: f32[256,128], index: 5, kind: output, shape index: {}]
  %s6 = sld [smem:[#allocation0]]
  $region57: #{tpu_custom_call.1} parent=0
    _
  %s8 = ssub.s32 1, %s6
  %s9 = scalar_select 0, %s8, %s6
  $region1: #{tpu_custom_call.1} parent=0
    #allocation2 [shape = 'u8[262144]{0}', space=vmem, size = 0x40000, scoped, tag = 'input window, operand 1, single buffered']
    #allocation3 [shape = 's32[2]{0}', space=sflag, size = 0x8, scoped, tag = 'scoped memory for tpu_custom_call.1']
    #allocation4 [shape = 's32[2]{0}', space=sflag, size = 0x8, scoped, tag = 'scoped memory for tpu_custom_call.1']
    #allocation5 [shape = 'u8[131072]{0}', space=vmem, size = 0x20000, scoped, tag = 'output window, operand 0']
    %10 = vsyncpa [#allocation3], 0
    %11 = vsyncpa [#allocation4], 0
    %s12 = scalar_lea.sflag [#allocation4], 1
    %13 = vsyncpa %s12, 0
    loop: start=0, step=1, limit=4
    $region2: #{tpu_custom_call.1} parent=1 // loop_pre_header
      _
    $region3: #{tpu_custom_call.1} parent=1 // loop_header
      %s15 = sphi 0, %s19
      %p16 = scmp.ge.s32.totalorder %s15, 4
      %s25 = sphi 0, %s27
      %s28 = sphi 0, %s25
      %s29 = sphi 0, %s28
      %s45 = sphi 0, %s29
      %s49 = sphi 0, %s49
      %s51 = sphi 0, %s49
      %s52 = sphi 0, %s51
      %s66 = sphi 0, %s52
      %s70 = sphi 0, %s70
      %s72 = sphi 0, %s70
      %s73 = sphi 0, %s72
      %s87 = sphi 0, %s73
      %s91 = sphi 0, %s91
      %s93 = sphi 0, %s91
      %s94 = sphi 0, %s93
      %s108 = sphi 0, %s94
      %s112 = sphi 0, %s112
      %s114 = sphi 0, %s112
      %s115 = sphi 0, %s114
      %s129 = sphi 0, %s115
      %s135 = sphi 0, %s137
      %s138 = sphi 0, %s135
      %s139 = sphi 0, %s138
      %s155 = sphi 0, %s139
    $region4: #{tpu_custom_call.1} parent=1 // loop_header_branch
      %18 = sbr.rel (%p16) target = $region8
    $region5: #{tpu_custom_call.1} parent=1 // loop_body
      %s20 = ssub.s32 %s15, 1
      %s21 = ssub.s32 %s15, 2
      %s22 = sadd.s32 %s15, 1
      %s23 = ssub.s32 %s15, %s22
      %p24 = scmp.eq.s32.totalorder %s23, 0
      %s26 = sadd.s32 %s25, 1
      %s27 = scalar_select %p24, %s25, %s26
      %p30 = pneg %p24
      %p31 = scmp.eq.s32.totalorder %s15, 1
      %p32 = por %p30, %p31
      %p33 = scmp.ne.s32.totalorder %s25, %s28
      %p34 = scmp.eq.s32.totalorder %s15, 0
      %p35 = por %p33, %p34
      %p36 = scmp.ne.s32.totalorder %s25, %s28
      %p37 = scmp.eq.s32.totalorder %s20, 1
      %p38 = por %p36, %p37
      %p39 = scmp.ne.s32.totalorder %s28, %s29
      %p40 = scmp.eq.s32.totalorder %s20, 0
      %p41 = por %p39, %p40
      %p42 = scmp.ne.s32.totalorder %s28, %s29
      %p43 = scmp.eq.s32.totalorder %s21, 1
      %p44 = por %p42, %p43
      %p46 = scmp.ne.s32.totalorder %s29, %s45
      %p47 = scmp.eq.s32.totalorder %s21, 0
      %p48 = por %p46, %p47
      %s50 = sadd.s32 %s49, 1
      %p53 = scmp.eq.s32.totalorder %s15, 1
      %p54 = scmp.ne.s32.totalorder %s49, %s51
      %p55 = scmp.eq.s32.totalorder %s15, 0
      %p56 = por %p54, %p55
      %p57 = scmp.ne.s32.totalorder %s49, %s51
      %p58 = scmp.eq.s32.totalorder %s20, 1
      %p59 = por %p57, %p58
      %p60 = scmp.ne.s32.totalorder %s51, %s52
      %p61 = scmp.eq.s32.totalorder %s20, 0
      %p62 = por %p60, %p61
      %p63 = scmp.ne.s32.totalorder %s51, %s52
      %p64 = scmp.eq.s32.totalorder %s21, 1
      %p65 = por %p63, %p64
      %p67 = scmp.ne.s32.totalorder %s52, %s66
      %p68 = scmp.eq.s32.totalorder %s21, 0
      %p69 = por %p67, %p68
      %s71 = sadd.s32 %s70, 1
      %p74 = scmp.eq.s32.totalorder %s15, 1
      %p75 = scmp.ne.s32.totalorder %s70, %s72
      %p76 = scmp.eq.s32.totalorder %s15, 0
      %p77 = por %p75, %p76
      %p78 = scmp.ne.s32.totalorder %s70, %s72
      %p79 = scmp.eq.s32.totalorder %s20, 1
      %p80 = por %p78, %p79
      %p81 = scmp.ne.s32.totalorder %s72, %s73
      %p82 = scmp.eq.s32.totalorder %s20, 0
      %p83 = por %p81, %p82
      %p84 = scmp.ne.s32.totalorder %s72, %s73
      %p85 = scmp.eq.s32.totalorder %s21, 1
      %p86 = por %p84, %p85
      %p88 = scmp.ne.s32.totalorder %s73, %s87
      %p89 = scmp.eq.s32.totalorder %s21, 0
      %p90 = por %p88, %p89
      %s92 = sadd.s32 %s91, 1
      %p95 = scmp.eq.s32.totalorder %s15, 1
      %p96 = scmp.ne.s32.totalorder %s91, %s93
      %p97 = scmp.eq.s32.totalorder %s15, 0
      %p98 = por %p96, %p97
      %p99 = scmp.ne.s32.totalorder %s91, %s93
      %p100 = scmp.eq.s32.totalorder %s20, 1
      %p101 = por %p99, %p100
      %p102 = scmp.ne.s32.totalorder %s93, %s94
      %p103 = scmp.eq.s32.totalorder %s20, 0
      %p104 = por %p102, %p103
      %p105 = scmp.ne.s32.totalorder %s93, %s94
      %p106 = scmp.eq.s32.totalorder %s21, 1
      %p107 = por %p105, %p106
      %p109 = scmp.ne.s32.totalorder %s94, %s108
      %p110 = scmp.eq.s32.totalorder %s21, 0
      %p111 = por %p109, %p110
      %s113 = sadd.s32 %s112, 1
      %p116 = scmp.eq.s32.totalorder %s15, 1
      %p117 = scmp.ne.s32.totalorder %s112, %s114
      %p118 = scmp.eq.s32.totalorder %s15, 0
      %p119 = por %p117, %p118
      %p120 = scmp.ne.s32.totalorder %s112, %s114
      %p121 = scmp.eq.s32.totalorder %s20, 1
      %p122 = por %p120, %p121
      %p123 = scmp.ne.s32.totalorder %s114, %s115
      %p124 = scmp.eq.s32.totalorder %s20, 0
      %p125 = por %p123, %p124
      %p126 = scmp.ne.s32.totalorder %s114, %s115
      %p127 = scmp.eq.s32.totalorder %s21, 1
      %p128 = por %p126, %p127
      %p130 = scmp.ne.s32.totalorder %s115, %s129
      %p131 = scmp.eq.s32.totalorder %s21, 0
      %p132 = por %p130, %p131
      %s133 = ssub.s32 %s15, %s22
      %p134 = scmp.eq.s32.totalorder %s133, 0
      %s136 = sadd.s32 %s135, 1
      %s137 = scalar_select %p134, %s135, %s136
      %p140 = pneg %p134
      %p141 = scmp.eq.s32.totalorder %s15, 1
      %p142 = por %p140, %p141
      %p143 = scmp.ne.s32.totalorder %s135, %s138
      %p144 = scmp.eq.s32.totalorder %s15, 0
      %p145 = por %p143, %p144
      %p146 = scmp.ne.s32.totalorder %s135, %s138
      %p147 = scmp.eq.s32.totalorder %s20, 1
      %p148 = por %p146, %p147
      %p149 = scmp.ne.s32.totalorder %s138, %s139
      %p150 = scmp.eq.s32.totalorder %s20, 0
      %p151 = por %p149, %p150
      %p152 = scmp.ne.s32.totalorder %s138, %s139
      %p153 = scmp.eq.s32.totalorder %s21, 1
      %p154 = por %p152, %p153
      %p156 = scmp.ne.s32.totalorder %s139, %s155
      %p157 = scmp.eq.s32.totalorder %s21, 0
      %p158 = por %p156, %p157
      %p159 = scmp.le.s32.totalorder 1, %s15
      %p160 = scmp.lt.s32.totalorder %s15, 3
      %p161 = pnand %p159, %p160
      %p162 = pneg %p161
      // Predicated region
      $region9: #{tpu_custom_call.1} parent=5 // pred_check
        _
      $region10: #{tpu_custom_call.1} parent=5 // pred_check_branch
        %164 = sbr.rel (%p161) target = $region12
      $region11: #{tpu_custom_call.1} parent=5 // pred_region
        %s165 = ssub.s32 %s15, 1
        // Predicated region
        $region13: #{tpu_custom_call.1} parent=11 // pred_check
          %p166 = pneg %p62
        $region14: #{tpu_custom_call.1} parent=11 // pred_check_branch
          %168 = sbr.rel (%p166) target = $region16
        $region15: #{tpu_custom_call.1} parent=11 // pred_region
          %s170 = ssub.s32 8192, 8192
          %171 = vsyncadd [#allocation3], %s170
          %s172 = sshll.u32 [#allocation2], 4
          %s173 = int_to_ptr.vmem [resolvable:$true] %s172
          %178 = dma.hbm_to_vmem [thread:$0]  %s1, 8192, %s173, [#allocation3], 128, 128, 8
        $region16: #{tpu_custom_call.1} parent=11 // pred_fallthru
          _
        // Predicated region
        $region17: #{tpu_custom_call.1} parent=11 // pred_check
          %p179 = pneg %p83
        $region18: #{tpu_custom_call.1} parent=11 // pred_check_branch
          %181 = sbr.rel (%p179) target = $region20
        $region19: #{tpu_custom_call.1} parent=11 // pred_region
          _
        $region20: #{tpu_custom_call.1} parent=11 // pred_fallthru
          _
        // Predicated region
        $region21: #{tpu_custom_call.1} parent=11 // pred_check
          %p182 = pneg %p104
        $region22: #{tpu_custom_call.1} parent=11 // pred_check_branch
          %184 = sbr.rel (%p182) target = $region24
        $region23: #{tpu_custom_call.1} parent=11 // pred_region
          _
        $region24: #{tpu_custom_call.1} parent=11 // pred_fallthru
          _
        // Predicated region
        $region25: #{tpu_custom_call.1} parent=11 // pred_check
          %p185 = pneg %p125
        $region26: #{tpu_custom_call.1} parent=11 // pred_check_branch
          %187 = sbr.rel (%p185) target = $region28
        $region27: #{tpu_custom_call.1} parent=11 // pred_region
          _
        $region28: #{tpu_custom_call.1} parent=11 // pred_fallthru
          _
      $region12: #{tpu_custom_call.1} parent=5 // pred_fallthru
        _
      %p188 = scmp.lt.s32.totalorder %s15, 2
      // Predicated region
      $region29: #{tpu_custom_call.1} parent=5 // pred_check
        %p189 = pneg %p188
      $region30: #{tpu_custom_call.1} parent=5 // pred_check_branch
        %191 = sbr.rel (%p189) target = $region32
      $region31: #{tpu_custom_call.1} parent=5 // pred_region
        // Predicated region
        $region33: #{tpu_custom_call.1} parent=31 // pred_check
          %p192 = pneg %p35
        $region34: #{tpu_custom_call.1} parent=31 // pred_check_branch
          %194 = sbr.rel (%p192) target = $region36
        $region35: #{tpu_custom_call.1} parent=31 // pred_region
          %s195 = smul.u32 16, %s15
          %p196 = scmp.lt.s32.totalorder %s195, 31
          %s197 = scalar_select %p196, %s195, 31
          %s198 = smul.addr %s197, 8
          %s199 = scalar_lea.vmem %s0, %s198
          %s200 = smul.u32 16, %s15
        $region36: #{tpu_custom_call.1} parent=31 // pred_fallthru
          _
      $region32: #{tpu_custom_call.1} parent=5 // pred_fallthru
        _
      %p201 = scmp.le.s32.totalorder 1, %s15
      %p202 = scmp.lt.s32.totalorder %s15, 3
      %p203 = pnand %p201, %p202
      %p204 = pneg %p203
      // Predicated region
      $region37: #{tpu_custom_call.1} parent=5 // pred_check
        _
      $region38: #{tpu_custom_call.1} parent=5 // pred_check_branch
        %206 = sbr.rel (%p203) target = $region40
      $region39: #{tpu_custom_call.1} parent=5 // pred_region
        %s207 = ssub.s32 %s15, 1
        // Predicated region
        $region41: #{tpu_custom_call.1} parent=39 // pred_check
          %p208 = pneg %p62
        $region42: #{tpu_custom_call.1} parent=39 // pred_check_branch
          %210 = sbr.rel (%p208) target = $region44
        $region43: #{tpu_custom_call.1} parent=39 // pred_region
          %211 = dma.done [#allocation3], 8192
        $region44: #{tpu_custom_call.1} parent=39 // pred_fallthru
          _
        %s212 = smul.u32 16, %s20
        %p213 = scmp.lt.s32.totalorder %s212, 31
        %s214 = scalar_select %p213, %s212, 31
        %s215 = smul.addr %s214, 8
        %s216 = scalar_lea.vmem %s0, %s215
        %p217 = pneg %p41
        %p218 = pneg %p38
        %p219 = pneg %p62
        %p220 = pneg %p59
        %p221 = pneg %p83
        %p222 = pneg %p80
        %p223 = pneg %p104
        %p224 = pneg %p101
        %p225 = pneg %p125
        %p226 = pneg %p122
        %p227 = pneg %p151
        %p228 = pneg %p148
        %s229 = sand.u32 %s138, 1
        %s230 = scalar_lea.sflag [#allocation4], %s229
        %s231 = sand.u32 %s138, 1
        %s232 = smul.addr %s231, 128
        %s233 = scalar_lea.vmem [#allocation5], %s232
        %s234 = smul.u32 16, %s20
        %p235 = scmp.lt.s32.totalorder %s234, 31
        %s236 = scalar_select %p235, %s234, 31
        %s237 = smul.addr %s236, 8
        %s238 = scalar_lea.vmem %s0, %s237
        %s239 = smul.u32 16, %s20
        %s240 = smul.u32 16, %s20
        %v241 = vld [vmem:[%s238] sm:$0xff]
        %v242 = vld [vmem:[%s238 + $0x8] sm:$0xff]
        %v243 = vld [vmem:[%s238 + $0x10] sm:$0xff]
        %v244 = vld [vmem:[%s238 + $0x18] sm:$0xff]
        %v245 = vld [vmem:[%s238 + $0x20] sm:$0xff]
        %v246 = vld [vmem:[%s238 + $0x28] sm:$0xff]
        %v247 = vld [vmem:[%s238 + $0x30] sm:$0xff]
        %v248 = vld [vmem:[%s238 + $0x38] sm:$0xff]
        %v249 = vld [vmem:[%s238 + $0x40] sm:$0xff]
        %v250 = vld [vmem:[%s238 + $0x48] sm:$0xff]
        %v251 = vld [vmem:[%s238 + $0x50] sm:$0xff]
        %v252 = vld [vmem:[%s238 + $0x58] sm:$0xff]
        %v253 = vld [vmem:[%s238 + $0x60] sm:$0xff]
        %v254 = vld [vmem:[%s238 + $0x68] sm:$0xff]
        %v255 = vld [vmem:[%s238 + $0x70] sm:$0xff]
        %v256 = vld [vmem:[%s238 + $0x78] sm:$0xff]
        %v257 = vlaneseq
        %v258 = vand.u32 %v257, 127
        %v259 = vadd.s32 %v258, 128
        %v260 = vadd.s32 %v258, 256
        %v261 = vadd.s32 %v258, 384
        %262 = vset.pattern.permute.xlu0 0
        %263 = vperm.xlu0 %262, %v241
        %v264 = vpop.permute.xlu0 %263
        %265 = vset.pattern.permute.xlu0 0
        %266 = vperm.xlu0 %265, %v242
        %v267 = vpop.permute.xlu0 %266
        %268 = vset.pattern.permute.xlu0 0
        %269 = vperm.xlu0 %268, %v243
        %v270 = vpop.permute.xlu0 %269
        %271 = vset.pattern.permute.xlu0 0
        %272 = vperm.xlu0 %271, %v244
        %v273 = vpop.permute.xlu0 %272
        %274 = vset.pattern.permute.xlu0 0
        %275 = vperm.xlu0 %274, %v245
        %v276 = vpop.permute.xlu0 %275
        %277 = vset.pattern.permute.xlu0 0
        %278 = vperm.xlu0 %277, %v246
        %v279 = vpop.permute.xlu0 %278
        %280 = vset.pattern.permute.xlu0 0
        %281 = vperm.xlu0 %280, %v247
        %v282 = vpop.permute.xlu0 %281
        %283 = vset.pattern.permute.xlu0 0
        %284 = vperm.xlu0 %283, %v248
        %v285 = vpop.permute.xlu0 %284
        %286 = vset.pattern.permute.xlu0 0
        %287 = vperm.xlu0 %286, %v249
        %v288 = vpop.permute.xlu0 %287
        %289 = vset.pattern.permute.xlu0 0
        %290 = vperm.xlu0 %289, %v250
        %v291 = vpop.permute.xlu0 %290
        %292 = vset.pattern.permute.xlu0 0
        %293 = vperm.xlu0 %292, %v251
        %v294 = vpop.permute.xlu0 %293
        %295 = vset.pattern.permute.xlu0 0
        %296 = vperm.xlu0 %295, %v252
        %v297 = vpop.permute.xlu0 %296
        %298 = vset.pattern.permute.xlu0 0
        %299 = vperm.xlu0 %298, %v253
        %v300 = vpop.permute.xlu0 %299
        %301 = vset.pattern.permute.xlu0 0
        %302 = vperm.xlu0 %301, %v254
        %v303 = vpop.permute.xlu0 %302
        %304 = vset.pattern.permute.xlu0 0
        %305 = vperm.xlu0 %304, %v255
        %v306 = vpop.permute.xlu0 %305
        %307 = vset.pattern.permute.xlu0 0
        %308 = vperm.xlu0 %307, %v256
        %v309 = vpop.permute.xlu0 %308
        %vm310 = vcmp.eq.s32.totalorder %v258, %v264
        %vm311 = vcmp.eq.s32.totalorder %v259, %v264
        %vm312 = vcmp.eq.s32.totalorder %v260, %v264
        %vm313 = vcmp.eq.s32.totalorder %v261, %v264
        %vm314 = vcmp.eq.s32.totalorder %v258, %v267
        %vm315 = vcmp.eq.s32.totalorder %v259, %v267
        %vm316 = vcmp.eq.s32.totalorder %v260, %v267
        %vm317 = vcmp.eq.s32.totalorder %v261, %v267
        %vm318 = vcmp.eq.s32.totalorder %v258, %v270
        %vm319 = vcmp.eq.s32.totalorder %v259, %v270
        %vm320 = vcmp.eq.s32.totalorder %v260, %v270
        %vm321 = vcmp.eq.s32.totalorder %v261, %v270
        %vm322 = vcmp.eq.s32.totalorder %v258, %v273
        %vm323 = vcmp.eq.s32.totalorder %v259, %v273
        %vm324 = vcmp.eq.s32.totalorder %v260, %v273
        %vm325 = vcmp.eq.s32.totalorder %v261, %v273
        %vm326 = vcmp.eq.s32.totalorder %v258, %v276
        %vm327 = vcmp.eq.s32.totalorder %v259, %v276
        %vm328 = vcmp.eq.s32.totalorder %v260, %v276
        %vm329 = vcmp.eq.s32.totalorder %v261, %v276
        %vm330 = vcmp.eq.s32.totalorder %v258, %v279
        %vm331 = vcmp.eq.s32.totalorder %v259, %v279
        %vm332 = vcmp.eq.s32.totalorder %v260, %v279
        %vm333 = vcmp.eq.s32.totalorder %v261, %v279
        %vm334 = vcmp.eq.s32.totalorder %v258, %v282
        %vm335 = vcmp.eq.s32.totalorder %v259, %v282
        %vm336 = vcmp.eq.s32.totalorder %v260, %v282
        %vm337 = vcmp.eq.s32.totalorder %v261, %v282
        %vm338 = vcmp.eq.s32.totalorder %v258, %v285
        %vm339 = vcmp.eq.s32.totalorder %v259, %v285
        %vm340 = vcmp.eq.s32.totalorder %v260, %v285
        %vm341 = vcmp.eq.s32.totalorder %v261, %v285
        %vm342 = vcmp.eq.s32.totalorder %v258, %v288
        %vm343 = vcmp.eq.s32.totalorder %v259, %v288
        %vm344 = vcmp.eq.s32.totalorder %v260, %v288
        %vm345 = vcmp.eq.s32.totalorder %v261, %v288
        %vm346 = vcmp.eq.s32.totalorder %v258, %v291
        %vm347 = vcmp.eq.s32.totalorder %v259, %v291
        %vm348 = vcmp.eq.s32.totalorder %v260, %v291
        %vm349 = vcmp.eq.s32.totalorder %v261, %v291
        %vm350 = vcmp.eq.s32.totalorder %v258, %v294
        %vm351 = vcmp.eq.s32.totalorder %v259, %v294
        %vm352 = vcmp.eq.s32.totalorder %v260, %v294
        %vm353 = vcmp.eq.s32.totalorder %v261, %v294
        %vm354 = vcmp.eq.s32.totalorder %v258, %v297
        %vm355 = vcmp.eq.s32.totalorder %v259, %v297
        %vm356 = vcmp.eq.s32.totalorder %v260, %v297
        %vm357 = vcmp.eq.s32.totalorder %v261, %v297
        %vm358 = vcmp.eq.s32.totalorder %v258, %v300
        %vm359 = vcmp.eq.s32.totalorder %v259, %v300
        %vm360 = vcmp.eq.s32.totalorder %v260, %v300
        %vm361 = vcmp.eq.s32.totalorder %v261, %v300
        %vm362 = vcmp.eq.s32.totalorder %v258, %v303
        %vm363 = vcmp.eq.s32.totalorder %v259, %v303
        %vm364 = vcmp.eq.s32.totalorder %v260, %v303
        %vm365 = vcmp.eq.s32.totalorder %v261, %v303
        %vm366 = vcmp.eq.s32.totalorder %v258, %v306
        %vm367 = vcmp.eq.s32.totalorder %v259, %v306
        %vm368 = vcmp.eq.s32.totalorder %v260, %v306
        %vm369 = vcmp.eq.s32.totalorder %v261, %v306
        %vm370 = vcmp.eq.s32.totalorder %v258, %v309
        %vm371 = vcmp.eq.s32.totalorder %v259, %v309
        %vm372 = vcmp.eq.s32.totalorder %v260, %v309
        %vm373 = vcmp.eq.s32.totalorder %v261, %v309
        %v374 = vsel %vm310, 1, 0
        %v375 = vsel %vm311, 1, 0
        %v376 = vsel %vm312, 1, 0
        %v377 = vsel %vm313, 1, 0
        %v378 = vsel %vm314, 1, 0
        %v379 = vsel %vm315, 1, 0
        %v380 = vsel %vm316, 1, 0
        %v381 = vsel %vm317, 1, 0
        %v382 = vsel %vm318, 1, 0
        %v383 = vsel %vm319, 1, 0
        %v384 = vsel %vm320, 1, 0
        %v385 = vsel %vm321, 1, 0
        %v386 = vsel %vm322, 1, 0
        %v387 = vsel %vm323, 1, 0
        %v388 = vsel %vm324, 1, 0
        %v389 = vsel %vm325, 1, 0
        %v390 = vsel %vm326, 1, 0
        %v391 = vsel %vm327, 1, 0
        %v392 = vsel %vm328, 1, 0
        %v393 = vsel %vm329, 1, 0
        %v394 = vsel %vm330, 1, 0
        %v395 = vsel %vm331, 1, 0
        %v396 = vsel %vm332, 1, 0
        %v397 = vsel %vm333, 1, 0
        %v398 = vsel %vm334, 1, 0
        %v399 = vsel %vm335, 1, 0
        %v400 = vsel %vm336, 1, 0
        %v401 = vsel %vm337, 1, 0
        %v402 = vsel %vm338, 1, 0
        %v403 = vsel %vm339, 1, 0
        %v404 = vsel %vm340, 1, 0
        %v405 = vsel %vm341, 1, 0
        %v406 = vsel %vm342, 1, 0
        %v407 = vsel %vm343, 1, 0
        %v408 = vsel %vm344, 1, 0
        %v409 = vsel %vm345, 1, 0
        %v410 = vsel %vm346, 1, 0
        %v411 = vsel %vm347, 1, 0
        %v412 = vsel %vm348, 1, 0
        %v413 = vsel %vm349, 1, 0
        %v414 = vsel %vm350, 1, 0
        %v415 = vsel %vm351, 1, 0
        %v416 = vsel %vm352, 1, 0
        %v417 = vsel %vm353, 1, 0
        %v418 = vsel %vm354, 1, 0
        %v419 = vsel %vm355, 1, 0
        %v420 = vsel %vm356, 1, 0
        %v421 = vsel %vm357, 1, 0
        %v422 = vsel %vm358, 1, 0
        %v423 = vsel %vm359, 1, 0
        %v424 = vsel %vm360, 1, 0
        %v425 = vsel %vm361, 1, 0
        %v426 = vsel %vm362, 1, 0
        %v427 = vsel %vm363, 1, 0
        %v428 = vsel %vm364, 1, 0
        %v429 = vsel %vm365, 1, 0
        %v430 = vsel %vm366, 1, 0
        %v431 = vsel %vm367, 1, 0
        %v432 = vsel %vm368, 1, 0
        %v433 = vsel %vm369, 1, 0
        %v434 = vsel %vm370, 1, 0
        %v435 = vsel %vm371, 1, 0
        %v436 = vsel %vm372, 1, 0
        %v437 = vsel %vm373, 1, 0
        %v438 = vcvt.s32.f32 %v374
        %v439 = vcvt.s32.f32 %v375
        %v440 = vcvt.s32.f32 %v376
        %v441 = vcvt.s32.f32 %v377
        %v442 = vcvt.s32.f32 %v378
        %v443 = vcvt.s32.f32 %v379
        %v444 = vcvt.s32.f32 %v380
        %v445 = vcvt.s32.f32 %v381
        %v446 = vcvt.s32.f32 %v382
        %v447 = vcvt.s32.f32 %v383
        %v448 = vcvt.s32.f32 %v384
        %v449 = vcvt.s32.f32 %v385
        %v450 = vcvt.s32.f32 %v386
        %v451 = vcvt.s32.f32 %v387
        %v452 = vcvt.s32.f32 %v388
        %v453 = vcvt.s32.f32 %v389
        %v454 = vcvt.s32.f32 %v390
        %v455 = vcvt.s32.f32 %v391
        %v456 = vcvt.s32.f32 %v392
        %v457 = vcvt.s32.f32 %v393
        %v458 = vcvt.s32.f32 %v394
        %v459 = vcvt.s32.f32 %v395
        %v460 = vcvt.s32.f32 %v396
        %v461 = vcvt.s32.f32 %v397
        %v462 = vcvt.s32.f32 %v398
        %v463 = vcvt.s32.f32 %v399
        %v464 = vcvt.s32.f32 %v400
        %v465 = vcvt.s32.f32 %v401
        %v466 = vcvt.s32.f32 %v402
        %v467 = vcvt.s32.f32 %v403
        %v468 = vcvt.s32.f32 %v404
        %v469 = vcvt.s32.f32 %v405
        %v470 = vcvt.s32.f32 %v406
        %v471 = vcvt.s32.f32 %v407
        %v472 = vcvt.s32.f32 %v408
        %v473 = vcvt.s32.f32 %v409
        %v474 = vcvt.s32.f32 %v410
        %v475 = vcvt.s32.f32 %v411
        %v476 = vcvt.s32.f32 %v412
        %v477 = vcvt.s32.f32 %v413
        %v478 = vcvt.s32.f32 %v414
        %v479 = vcvt.s32.f32 %v415
        %v480 = vcvt.s32.f32 %v416
        %v481 = vcvt.s32.f32 %v417
        %v482 = vcvt.s32.f32 %v418
        %v483 = vcvt.s32.f32 %v419
        %v484 = vcvt.s32.f32 %v420
        %v485 = vcvt.s32.f32 %v421
        %v486 = vcvt.s32.f32 %v422
        %v487 = vcvt.s32.f32 %v423
        %v488 = vcvt.s32.f32 %v424
        %v489 = vcvt.s32.f32 %v425
        %v490 = vcvt.s32.f32 %v426
        %v491 = vcvt.s32.f32 %v427
        %v492 = vcvt.s32.f32 %v428
        %v493 = vcvt.s32.f32 %v429
        %v494 = vcvt.s32.f32 %v430
        %v495 = vcvt.s32.f32 %v431
        %v496 = vcvt.s32.f32 %v432
        %v497 = vcvt.s32.f32 %v433
        %v498 = vcvt.s32.f32 %v434
        %v499 = vcvt.s32.f32 %v435
        %v500 = vcvt.s32.f32 %v436
        %v501 = vcvt.s32.f32 %v437
        %v502 = vadd.f32 %v438, 0.0
        %v503 = vadd.f32 %v439, 0.0
        %v504 = vadd.f32 %v440, 0.0
        %v505 = vadd.f32 %v441, 0.0
        %v506 = vadd.f32 %v442, 0.0
        %v507 = vadd.f32 %v443, 0.0
        %v508 = vadd.f32 %v444, 0.0
        %v509 = vadd.f32 %v445, 0.0
        %v510 = vadd.f32 %v446, 0.0
        %v511 = vadd.f32 %v447, 0.0
        %v512 = vadd.f32 %v448, 0.0
        %v513 = vadd.f32 %v449, 0.0
        %v514 = vadd.f32 %v450, 0.0
        %v515 = vadd.f32 %v451, 0.0
        %v516 = vadd.f32 %v452, 0.0
        %v517 = vadd.f32 %v453, 0.0
        %v518 = vadd.f32 %v454, 0.0
        %v519 = vadd.f32 %v455, 0.0
        %v520 = vadd.f32 %v456, 0.0
        %v521 = vadd.f32 %v457, 0.0
        %v522 = vadd.f32 %v458, 0.0
        %v523 = vadd.f32 %v459, 0.0
        %v524 = vadd.f32 %v460, 0.0
        %v525 = vadd.f32 %v461, 0.0
        %v526 = vadd.f32 %v462, 0.0
        %v527 = vadd.f32 %v463, 0.0
        %v528 = vadd.f32 %v464, 0.0
        %v529 = vadd.f32 %v465, 0.0
        %v530 = vadd.f32 %v466, 0.0
        %v531 = vadd.f32 %v467, 0.0
        %v532 = vadd.f32 %v468, 0.0
        %v533 = vadd.f32 %v469, 0.0
        %v534 = vadd.f32 %v470, 0.0
        %v535 = vadd.f32 %v471, 0.0
        %v536 = vadd.f32 %v472, 0.0
        %v537 = vadd.f32 %v473, 0.0
        %v538 = vadd.f32 %v474, 0.0
        %v539 = vadd.f32 %v475, 0.0
        %v540 = vadd.f32 %v476, 0.0
        %v541 = vadd.f32 %v477, 0.0
        %v542 = vadd.f32 %v478, 0.0
        %v543 = vadd.f32 %v479, 0.0
        %v544 = vadd.f32 %v480, 0.0
        %v545 = vadd.f32 %v481, 0.0
        %v546 = vadd.f32 %v482, 0.0
        %v547 = vadd.f32 %v483, 0.0
        %v548 = vadd.f32 %v484, 0.0
        %v549 = vadd.f32 %v485, 0.0
        %v550 = vadd.f32 %v486, 0.0
        %v551 = vadd.f32 %v487, 0.0
        %v552 = vadd.f32 %v488, 0.0
        %v553 = vadd.f32 %v489, 0.0
        %v554 = vadd.f32 %v490, 0.0
        %v555 = vadd.f32 %v491, 0.0
        %v556 = vadd.f32 %v492, 0.0
        %v557 = vadd.f32 %v493, 0.0
        %v558 = vadd.f32 %v494, 0.0
        %v559 = vadd.f32 %v495, 0.0
        %v560 = vadd.f32 %v496, 0.0
        %v561 = vadd.f32 %v497, 0.0
        %v562 = vadd.f32 %v498, 0.0
        %v563 = vadd.f32 %v499, 0.0
        %v564 = vadd.f32 %v500, 0.0
        %v565 = vadd.f32 %v501, 0.0
        %v566 = vadd.s32 %v241, 128
        %v567 = vadd.s32 %v242, 128
        %v568 = vadd.s32 %v243, 128
        %v569 = vadd.s32 %v244, 128
        %v570 = vadd.s32 %v245, 128
        %v571 = vadd.s32 %v246, 128
        %v572 = vadd.s32 %v247, 128
        %v573 = vadd.s32 %v248, 128
        %v574 = vadd.s32 %v249, 128
        %v575 = vadd.s32 %v250, 128
        %v576 = vadd.s32 %v251, 128
        %v577 = vadd.s32 %v252, 128
        %v578 = vadd.s32 %v253, 128
        %v579 = vadd.s32 %v254, 128
        %v580 = vadd.s32 %v255, 128
        %v581 = vadd.s32 %v256, 128
        %582 = vset.pattern.permute.xlu0 1
        %583 = vperm.xlu0 %582, %v566
        %v584 = vpop.permute.xlu0 %583
        %585 = vset.pattern.permute.xlu0 1
        %586 = vperm.xlu0 %585, %v567
        %v587 = vpop.permute.xlu0 %586
        %588 = vset.pattern.permute.xlu0 1
        %589 = vperm.xlu0 %588, %v568
        %v590 = vpop.permute.xlu0 %589
        %591 = vset.pattern.permute.xlu0 1
        %592 = vperm.xlu0 %591, %v569
        %v593 = vpop.permute.xlu0 %592
        %594 = vset.pattern.permute.xlu0 1
        %595 = vperm.xlu0 %594, %v570
        %v596 = vpop.permute.xlu0 %595
        %597 = vset.pattern.permute.xlu0 1
        %598 = vperm.xlu0 %597, %v571
        %v599 = vpop.permute.xlu0 %598
        %600 = vset.pattern.permute.xlu0 1
        %601 = vperm.xlu0 %600, %v572
        %v602 = vpop.permute.xlu0 %601
        %603 = vset.pattern.permute.xlu0 1
        %604 = vperm.xlu0 %603, %v573
        %v605 = vpop.permute.xlu0 %604
        %606 = vset.pattern.permute.xlu0 1
        %607 = vperm.xlu0 %606, %v574
        %v608 = vpop.permute.xlu0 %607
        %609 = vset.pattern.permute.xlu0 1
        %610 = vperm.xlu0 %609, %v575
        %v611 = vpop.permute.xlu0 %610
        %612 = vset.pattern.permute.xlu0 1
        %613 = vperm.xlu0 %612, %v576
        %v614 = vpop.permute.xlu0 %613
        %615 = vset.pattern.permute.xlu0 1
        %616 = vperm.xlu0 %615, %v577
        %v617 = vpop.permute.xlu0 %616
        %618 = vset.pattern.permute.xlu0 1
        %619 = vperm.xlu0 %618, %v578
        %v620 = vpop.permute.xlu0 %619
        %621 = vset.pattern.permute.xlu0 1
        %622 = vperm.xlu0 %621, %v579
        %v623 = vpop.permute.xlu0 %622
        %624 = vset.pattern.permute.xlu0 1
        %625 = vperm.xlu0 %624, %v580
        %v626 = vpop.permute.xlu0 %625
        %627 = vset.pattern.permute.xlu0 1
        %628 = vperm.xlu0 %627, %v581
        %v629 = vpop.permute.xlu0 %628
        %vm630 = vcmp.eq.s32.totalorder %v258, %v584
        %vm631 = vcmp.eq.s32.totalorder %v259, %v584
        %vm632 = vcmp.eq.s32.totalorder %v260, %v584
        %vm633 = vcmp.eq.s32.totalorder %v261, %v584
        %vm634 = vcmp.eq.s32.totalorder %v258, %v587
        %vm635 = vcmp.eq.s32.totalorder %v259, %v587
        %vm636 = vcmp.eq.s32.totalorder %v260, %v587
        %vm637 = vcmp.eq.s32.totalorder %v261, %v587
        %vm638 = vcmp.eq.s32.totalorder %v258, %v590
        %vm639 = vcmp.eq.s32.totalorder %v259, %v590
        %vm640 = vcmp.eq.s32.totalorder %v260, %v590
        %vm641 = vcmp.eq.s32.totalorder %v261, %v590
        %vm642 = vcmp.eq.s32.totalorder %v258, %v593
        %vm643 = vcmp.eq.s32.totalorder %v259, %v593
        %vm644 = vcmp.eq.s32.totalorder %v260, %v593
        %vm645 = vcmp.eq.s32.totalorder %v261, %v593
        %vm646 = vcmp.eq.s32.totalorder %v258, %v596
        %vm647 = vcmp.eq.s32.totalorder %v259, %v596
        %vm648 = vcmp.eq.s32.totalorder %v260, %v596
        %vm649 = vcmp.eq.s32.totalorder %v261, %v596
        %vm650 = vcmp.eq.s32.totalorder %v258, %v599
        %vm651 = vcmp.eq.s32.totalorder %v259, %v599
        %vm652 = vcmp.eq.s32.totalorder %v260, %v599
        %vm653 = vcmp.eq.s32.totalorder %v261, %v599
        %vm654 = vcmp.eq.s32.totalorder %v258, %v602
        %vm655 = vcmp.eq.s32.totalorder %v259, %v602
        %vm656 = vcmp.eq.s32.totalorder %v260, %v602
        %vm657 = vcmp.eq.s32.totalorder %v261, %v602
        %vm658 = vcmp.eq.s32.totalorder %v258, %v605
        %vm659 = vcmp.eq.s32.totalorder %v259, %v605
        %vm660 = vcmp.eq.s32.totalorder %v260, %v605
        %vm661 = vcmp.eq.s32.totalorder %v261, %v605
        %vm662 = vcmp.eq.s32.totalorder %v258, %v608
        %vm663 = vcmp.eq.s32.totalorder %v259, %v608
        %vm664 = vcmp.eq.s32.totalorder %v260, %v608
        %vm665 = vcmp.eq.s32.totalorder %v261, %v608
        %vm666 = vcmp.eq.s32.totalorder %v258, %v611
        %vm667 = vcmp.eq.s32.totalorder %v259, %v611
        %vm668 = vcmp.eq.s32.totalorder %v260, %v611
        %vm669 = vcmp.eq.s32.totalorder %v261, %v611
        %vm670 = vcmp.eq.s32.totalorder %v258, %v614
        %vm671 = vcmp.eq.s32.totalorder %v259, %v614
        %vm672 = vcmp.eq.s32.totalorder %v260, %v614
        %vm673 = vcmp.eq.s32.totalorder %v261, %v614
        %vm674 = vcmp.eq.s32.totalorder %v258, %v617
        %vm675 = vcmp.eq.s32.totalorder %v259, %v617
        %vm676 = vcmp.eq.s32.totalorder %v260, %v617
        %vm677 = vcmp.eq.s32.totalorder %v261, %v617
        %vm678 = vcmp.eq.s32.totalorder %v258, %v620
        %vm679 = vcmp.eq.s32.totalorder %v259, %v620
        %vm680 = vcmp.eq.s32.totalorder %v260, %v620
        %vm681 = vcmp.eq.s32.totalorder %v261, %v620
        %vm682 = vcmp.eq.s32.totalorder %v258, %v623
        %vm683 = vcmp.eq.s32.totalorder %v259, %v623
        %vm684 = vcmp.eq.s32.totalorder %v260, %v623
        %vm685 = vcmp.eq.s32.totalorder %v261, %v623
        %vm686 = vcmp.eq.s32.totalorder %v258, %v626
        %vm687 = vcmp.eq.s32.totalorder %v259, %v626
        %vm688 = vcmp.eq.s32.totalorder %v260, %v626
        %vm689 = vcmp.eq.s32.totalorder %v261, %v626
        %vm690 = vcmp.eq.s32.totalorder %v258, %v629
        %vm691 = vcmp.eq.s32.totalorder %v259, %v629
        %vm692 = vcmp.eq.s32.totalorder %v260, %v629
        %vm693 = vcmp.eq.s32.totalorder %v261, %v629
        %v694 = vsel %vm630, 1, 0
        %v695 = vsel %vm631, 1, 0
        %v696 = vsel %vm632, 1, 0
        %v697 = vsel %vm633, 1, 0
        %v698 = vsel %vm634, 1, 0
        %v699 = vsel %vm635, 1, 0
        %v700 = vsel %vm636, 1, 0
        %v701 = vsel %vm637, 1, 0
        %v702 = vsel %vm638, 1, 0
        %v703 = vsel %vm639, 1, 0
        %v704 = vsel %vm640, 1, 0
        %v705 = vsel %vm641, 1, 0
        %v706 = vsel %vm642, 1, 0
        %v707 = vsel %vm643, 1, 0
        %v708 = vsel %vm644, 1, 0
        %v709 = vsel %vm645, 1, 0
        %v710 = vsel %vm646, 1, 0
        %v711 = vsel %vm647, 1, 0
        %v712 = vsel %vm648, 1, 0
        %v713 = vsel %vm649, 1, 0
        %v714 = vsel %vm650, 1, 0
        %v715 = vsel %vm651, 1, 0
        %v716 = vsel %vm652, 1, 0
        %v717 = vsel %vm653, 1, 0
        %v718 = vsel %vm654, 1, 0
        %v719 = vsel %vm655, 1, 0
        %v720 = vsel %vm656, 1, 0
        %v721 = vsel %vm657, 1, 0
        %v722 = vsel %vm658, 1, 0
        %v723 = vsel %vm659, 1, 0
        %v724 = vsel %vm660, 1, 0
        %v725 = vsel %vm661, 1, 0
        %v726 = vsel %vm662, 1, 0
        %v727 = vsel %vm663, 1, 0
        %v728 = vsel %vm664, 1, 0
        %v729 = vsel %vm665, 1, 0
        %v730 = vsel %vm666, 1, 0
        %v731 = vsel %vm667, 1, 0
        %v732 = vsel %vm668, 1, 0
        %v733 = vsel %vm669, 1, 0
        %v734 = vsel %vm670, 1, 0
        %v735 = vsel %vm671, 1, 0
        %v736 = vsel %vm672, 1, 0
        %v737 = vsel %vm673, 1, 0
        %v738 = vsel %vm674, 1, 0
        %v739 = vsel %vm675, 1, 0
        %v740 = vsel %vm676, 1, 0
        %v741 = vsel %vm677, 1, 0
        %v742 = vsel %vm678, 1, 0
        %v743 = vsel %vm679, 1, 0
        %v744 = vsel %vm680, 1, 0
        %v745 = vsel %vm681, 1, 0
        %v746 = vsel %vm682, 1, 0
        %v747 = vsel %vm683, 1, 0
        %v748 = vsel %vm684, 1, 0
        %v749 = vsel %vm685, 1, 0
        %v750 = vsel %vm686, 1, 0
        %v751 = vsel %vm687, 1, 0
        %v752 = vsel %vm688, 1, 0
        %v753 = vsel %vm689, 1, 0
        %v754 = vsel %vm690, 1, 0
        %v755 = vsel %vm691, 1, 0
        %v756 = vsel %vm692, 1, 0
        %v757 = vsel %vm693, 1, 0
        %v758 = vcvt.s32.f32 %v694
        %v759 = vcvt.s32.f32 %v695
        %v760 = vcvt.s32.f32 %v696
        %v761 = vcvt.s32.f32 %v697
        %v762 = vcvt.s32.f32 %v698
        %v763 = vcvt.s32.f32 %v699
        %v764 = vcvt.s32.f32 %v700
        %v765 = vcvt.s32.f32 %v701
        %v766 = vcvt.s32.f32 %v702
        %v767 = vcvt.s32.f32 %v703
        %v768 = vcvt.s32.f32 %v704
        %v769 = vcvt.s32.f32 %v705
        %v770 = vcvt.s32.f32 %v706
        %v771 = vcvt.s32.f32 %v707
        %v772 = vcvt.s32.f32 %v708
        %v773 = vcvt.s32.f32 %v709
        %v774 = vcvt.s32.f32 %v710
        %v775 = vcvt.s32.f32 %v711
        %v776 = vcvt.s32.f32 %v712
        %v777 = vcvt.s32.f32 %v713
        %v778 = vcvt.s32.f32 %v714
        %v779 = vcvt.s32.f32 %v715
        %v780 = vcvt.s32.f32 %v716
        %v781 = vcvt.s32.f32 %v717
        %v782 = vcvt.s32.f32 %v718
        %v783 = vcvt.s32.f32 %v719
        %v784 = vcvt.s32.f32 %v720
        %v785 = vcvt.s32.f32 %v721
        %v786 = vcvt.s32.f32 %v722
        %v787 = vcvt.s32.f32 %v723
        %v788 = vcvt.s32.f32 %v724
        %v789 = vcvt.s32.f32 %v725
        %v790 = vcvt.s32.f32 %v726
        %v791 = vcvt.s32.f32 %v727
        %v792 = vcvt.s32.f32 %v728
        %v793 = vcvt.s32.f32 %v729
        %v794 = vcvt.s32.f32 %v730
        %v795 = vcvt.s32.f32 %v731
        %v796 = vcvt.s32.f32 %v732
        %v797 = vcvt.s32.f32 %v733
        %v798 = vcvt.s32.f32 %v734
        %v799 = vcvt.s32.f32 %v735
        %v800 = vcvt.s32.f32 %v736
        %v801 = vcvt.s32.f32 %v737
        %v802 = vcvt.s32.f32 %v738
        %v803 = vcvt.s32.f32 %v739
        %v804 = vcvt.s32.f32 %v740
        %v805 = vcvt.s32.f32 %v741
        %v806 = vcvt.s32.f32 %v742
        %v807 = vcvt.s32.f32 %v743
        %v808 = vcvt.s32.f32 %v744
        %v809 = vcvt.s32.f32 %v745
        %v810 = vcvt.s32.f32 %v746
        %v811 = vcvt.s32.f32 %v747
        %v812 = vcvt.s32.f32 %v748
        %v813 = vcvt.s32.f32 %v749
        %v814 = vcvt.s32.f32 %v750
        %v815 = vcvt.s32.f32 %v751
        %v816 = vcvt.s32.f32 %v752
        %v817 = vcvt.s32.f32 %v753
        %v818 = vcvt.s32.f32 %v754
        %v819 = vcvt.s32.f32 %v755
        %v820 = vcvt.s32.f32 %v756
        %v821 = vcvt.s32.f32 %v757
        %v822 = vadd.f32 %v502, %v758
        %v823 = vadd.f32 %v503, %v759
        %v824 = vadd.f32 %v504, %v760
        %v825 = vadd.f32 %v505, %v761
        %v826 = vadd.f32 %v506, %v762
        %v827 = vadd.f32 %v507, %v763
        %v828 = vadd.f32 %v508, %v764
        %v829 = vadd.f32 %v509, %v765
        %v830 = vadd.f32 %v510, %v766
        %v831 = vadd.f32 %v511, %v767
        %v832 = vadd.f32 %v512, %v768
        %v833 = vadd.f32 %v513, %v769
        %v834 = vadd.f32 %v514, %v770
        %v835 = vadd.f32 %v515, %v771
        %v836 = vadd.f32 %v516, %v772
        %v837 = vadd.f32 %v517, %v773
        %v838 = vadd.f32 %v518, %v774
        %v839 = vadd.f32 %v519, %v775
        %v840 = vadd.f32 %v520, %v776
        %v841 = vadd.f32 %v521, %v777
        %v842 = vadd.f32 %v522, %v778
        %v843 = vadd.f32 %v523, %v779
        %v844 = vadd.f32 %v524, %v780
        %v845 = vadd.f32 %v525, %v781
        %v846 = vadd.f32 %v526, %v782
        %v847 = vadd.f32 %v527, %v783
        %v848 = vadd.f32 %v528, %v784
        %v849 = vadd.f32 %v529, %v785
        %v850 = vadd.f32 %v530, %v786
        %v851 = vadd.f32 %v531, %v787
        %v852 = vadd.f32 %v532, %v788
        %v853 = vadd.f32 %v533, %v789
        %v854 = vadd.f32 %v534, %v790
        %v855 = vadd.f32 %v535, %v791
        %v856 = vadd.f32 %v536, %v792
        %v857 = vadd.f32 %v537, %v793
        %v858 = vadd.f32 %v538, %v794
        %v859 = vadd.f32 %v539, %v795
        %v860 = vadd.f32 %v540, %v796
        %v861 = vadd.f32 %v541, %v797
        %v862 = vadd.f32 %v542, %v798
        %v863 = vadd.f32 %v543, %v799
        %v864 = vadd.f32 %v544, %v800
        %v865 = vadd.f32 %v545, %v801
        %v866 = vadd.f32 %v546, %v802
        %v867 = vadd.f32 %v547, %v803
        %v868 = vadd.f32 %v548, %v804
        %v869 = vadd.f32 %v549, %v805
        %v870 = vadd.f32 %v550, %v806
        %v871 = vadd.f32 %v551, %v807
        %v872 = vadd.f32 %v552, %v808
        %v873 = vadd.f32 %v553, %v809
        %v874 = vadd.f32 %v554, %v810
        %v875 = vadd.f32 %v555, %v811
        %v876 = vadd.f32 %v556, %v812
        %v877 = vadd.f32 %v557, %v813
        %v878 = vadd.f32 %v558, %v814
        %v879 = vadd.f32 %v559, %v815
        %v880 = vadd.f32 %v560, %v816
        %v881 = vadd.f32 %v561, %v817
        %v882 = vadd.f32 %v562, %v818
        %v883 = vadd.f32 %v563, %v819
        %v884 = vadd.f32 %v564, %v820
        %v885 = vadd.f32 %v565, %v821
        %v886 = vadd.s32 %v241, 256
        %v887 = vadd.s32 %v242, 256
        %v888 = vadd.s32 %v243, 256
        %v889 = vadd.s32 %v244, 256
        %v890 = vadd.s32 %v245, 256
        %v891 = vadd.s32 %v246, 256
        %v892 = vadd.s32 %v247, 256
        %v893 = vadd.s32 %v248, 256
        %v894 = vadd.s32 %v249, 256
        %v895 = vadd.s32 %v250, 256
        %v896 = vadd.s32 %v251, 256
        %v897 = vadd.s32 %v252, 256
        %v898 = vadd.s32 %v253, 256
        %v899 = vadd.s32 %v254, 256
        %v900 = vadd.s32 %v255, 256
        %v901 = vadd.s32 %v256, 256
        %902 = vset.pattern.permute.xlu0 2
        %903 = vperm.xlu0 %902, %v886
        %v904 = vpop.permute.xlu0 %903
        %905 = vset.pattern.permute.xlu0 2
        %906 = vperm.xlu0 %905, %v887
        %v907 = vpop.permute.xlu0 %906
        %908 = vset.pattern.permute.xlu0 2
        %909 = vperm.xlu0 %908, %v888
        %v910 = vpop.permute.xlu0 %909
        %911 = vset.pattern.permute.xlu0 2
        %912 = vperm.xlu0 %911, %v889
        %v913 = vpop.permute.xlu0 %912
        %914 = vset.pattern.permute.xlu0 2
        %915 = vperm.xlu0 %914, %v890
        %v916 = vpop.permute.xlu0 %915
        %917 = vset.pattern.permute.xlu0 2
        %918 = vperm.xlu0 %917, %v891
        %v919 = vpop.permute.xlu0 %918
        %920 = vset.pattern.permute.xlu0 2
        %921 = vperm.xlu0 %920, %v892
        %v922 = vpop.permute.xlu0 %921
        %923 = vset.pattern.permute.xlu0 2
        %924 = vperm.xlu0 %923, %v893
        %v925 = vpop.permute.xlu0 %924
        %926 = vset.pattern.permute.xlu0 2
        %927 = vperm.xlu0 %926, %v894
        %v928 = vpop.permute.xlu0 %927
        %929 = vset.pattern.permute.xlu0 2
        %930 = vperm.xlu0 %929, %v895
        %v931 = vpop.permute.xlu0 %930
        %932 = vset.pattern.permute.xlu0 2
        %933 = vperm.xlu0 %932, %v896
        %v934 = vpop.permute.xlu0 %933
        %935 = vset.pattern.permute.xlu0 2
        %936 = vperm.xlu0 %935, %v897
        %v937 = vpop.permute.xlu0 %936
        %938 = vset.pattern.permute.xlu0 2
        %939 = vperm.xlu0 %938, %v898
        %v940 = vpop.permute.xlu0 %939
        %941 = vset.pattern.permute.xlu0 2
        %942 = vperm.xlu0 %941, %v899
        %v943 = vpop.permute.xlu0 %942
        %944 = vset.pattern.permute.xlu0 2
        %945 = vperm.xlu0 %944, %v900
        %v946 = vpop.permute.xlu0 %945
        %947 = vset.pattern.permute.xlu0 2
        %948 = vperm.xlu0 %947, %v901
        %v949 = vpop.permute.xlu0 %948
        %vm950 = vcmp.eq.s32.totalorder %v258, %v904
        %vm951 = vcmp.eq.s32.totalorder %v259, %v904
        %vm952 = vcmp.eq.s32.totalorder %v260, %v904
        %vm953 = vcmp.eq.s32.totalorder %v261, %v904
        %vm954 = vcmp.eq.s32.totalorder %v258, %v907
        %vm955 = vcmp.eq.s32.totalorder %v259, %v907
        %vm956 = vcmp.eq.s32.totalorder %v260, %v907
        %vm957 = vcmp.eq.s32.totalorder %v261, %v907
        %vm958 = vcmp.eq.s32.totalorder %v258, %v910
        %vm959 = vcmp.eq.s32.totalorder %v259, %v910
        %vm960 = vcmp.eq.s32.totalorder %v260, %v910
        %vm961 = vcmp.eq.s32.totalorder %v261, %v910
        %vm962 = vcmp.eq.s32.totalorder %v258, %v913
        %vm963 = vcmp.eq.s32.totalorder %v259, %v913
        %vm964 = vcmp.eq.s32.totalorder %v260, %v913
        %vm965 = vcmp.eq.s32.totalorder %v261, %v913
        %vm966 = vcmp.eq.s32.totalorder %v258, %v916
        %vm967 = vcmp.eq.s32.totalorder %v259, %v916
        %vm968 = vcmp.eq.s32.totalorder %v260, %v916
        %vm969 = vcmp.eq.s32.totalorder %v261, %v916
        %vm970 = vcmp.eq.s32.totalorder %v258, %v919
        %vm971 = vcmp.eq.s32.totalorder %v259, %v919
        %vm972 = vcmp.eq.s32.totalorder %v260, %v919
        %vm973 = vcmp.eq.s32.totalorder %v261, %v919
        %vm974 = vcmp.eq.s32.totalorder %v258, %v922
        %vm975 = vcmp.eq.s32.totalorder %v259, %v922
        %vm976 = vcmp.eq.s32.totalorder %v260, %v922
        %vm977 = vcmp.eq.s32.totalorder %v261, %v922
        %vm978 = vcmp.eq.s32.totalorder %v258, %v925
        %vm979 = vcmp.eq.s32.totalorder %v259, %v925
        %vm980 = vcmp.eq.s32.totalorder %v260, %v925
        %vm981 = vcmp.eq.s32.totalorder %v261, %v925
        %vm982 = vcmp.eq.s32.totalorder %v258, %v928
        %vm983 = vcmp.eq.s32.totalorder %v259, %v928
        %vm984 = vcmp.eq.s32.totalorder %v260, %v928
        %vm985 = vcmp.eq.s32.totalorder %v261, %v928
        %vm986 = vcmp.eq.s32.totalorder %v258, %v931
        %vm987 = vcmp.eq.s32.totalorder %v259, %v931
        %vm988 = vcmp.eq.s32.totalorder %v260, %v931
        %vm989 = vcmp.eq.s32.totalorder %v261, %v931
        %vm990 = vcmp.eq.s32.totalorder %v258, %v934
        %vm991 = vcmp.eq.s32.totalorder %v259, %v934
        %vm992 = vcmp.eq.s32.totalorder %v260, %v934
        %vm993 = vcmp.eq.s32.totalorder %v261, %v934
        %vm994 = vcmp.eq.s32.totalorder %v258, %v937
        %vm995 = vcmp.eq.s32.totalorder %v259, %v937
        %vm996 = vcmp.eq.s32.totalorder %v260, %v937
        %vm997 = vcmp.eq.s32.totalorder %v261, %v937
        %vm998 = vcmp.eq.s32.totalorder %v258, %v940
        %vm999 = vcmp.eq.s32.totalorder %v259, %v940
        %vm1000 = vcmp.eq.s32.totalorder %v260, %v940
        %vm1001 = vcmp.eq.s32.totalorder %v261, %v940
        %vm1002 = vcmp.eq.s32.totalorder %v258, %v943
        %vm1003 = vcmp.eq.s32.totalorder %v259, %v943
        %vm1004 = vcmp.eq.s32.totalorder %v260, %v943
        %vm1005 = vcmp.eq.s32.totalorder %v261, %v943
        %vm1006 = vcmp.eq.s32.totalorder %v258, %v946
        %vm1007 = vcmp.eq.s32.totalorder %v259, %v946
        %vm1008 = vcmp.eq.s32.totalorder %v260, %v946
        %vm1009 = vcmp.eq.s32.totalorder %v261, %v946
        %vm1010 = vcmp.eq.s32.totalorder %v258, %v949
        %vm1011 = vcmp.eq.s32.totalorder %v259, %v949
        %vm1012 = vcmp.eq.s32.totalorder %v260, %v949
        %vm1013 = vcmp.eq.s32.totalorder %v261, %v949
        %v1014 = vsel %vm950, 1, 0
        %v1015 = vsel %vm951, 1, 0
        %v1016 = vsel %vm952, 1, 0
        %v1017 = vsel %vm953, 1, 0
        %v1018 = vsel %vm954, 1, 0
        %v1019 = vsel %vm955, 1, 0
        %v1020 = vsel %vm956, 1, 0
        %v1021 = vsel %vm957, 1, 0
        %v1022 = vsel %vm958, 1, 0
        %v1023 = vsel %vm959, 1, 0
        %v1024 = vsel %vm960, 1, 0
        %v1025 = vsel %vm961, 1, 0
        %v1026 = vsel %vm962, 1, 0
        %v1027 = vsel %vm963, 1, 0
        %v1028 = vsel %vm964, 1, 0
        %v1029 = vsel %vm965, 1, 0
        %v1030 = vsel %vm966, 1, 0
        %v1031 = vsel %vm967, 1, 0
        %v1032 = vsel %vm968, 1, 0
        %v1033 = vsel %vm969, 1, 0
        %v1034 = vsel %vm970, 1, 0
        %v1035 = vsel %vm971, 1, 0
        %v1036 = vsel %vm972, 1, 0
        %v1037 = vsel %vm973, 1, 0
        %v1038 = vsel %vm974, 1, 0
        %v1039 = vsel %vm975, 1, 0
        %v1040 = vsel %vm976, 1, 0
        %v1041 = vsel %vm977, 1, 0
        %v1042 = vsel %vm978, 1, 0
        %v1043 = vsel %vm979, 1, 0
        %v1044 = vsel %vm980, 1, 0
        %v1045 = vsel %vm981, 1, 0
        %v1046 = vsel %vm982, 1, 0
        %v1047 = vsel %vm983, 1, 0
        %v1048 = vsel %vm984, 1, 0
        %v1049 = vsel %vm985, 1, 0
        %v1050 = vsel %vm986, 1, 0
        %v1051 = vsel %vm987, 1, 0
        %v1052 = vsel %vm988, 1, 0
        %v1053 = vsel %vm989, 1, 0
        %v1054 = vsel %vm990, 1, 0
        %v1055 = vsel %vm991, 1, 0
        %v1056 = vsel %vm992, 1, 0
        %v1057 = vsel %vm993, 1, 0
        %v1058 = vsel %vm994, 1, 0
        %v1059 = vsel %vm995, 1, 0
        %v1060 = vsel %vm996, 1, 0
        %v1061 = vsel %vm997, 1, 0
        %v1062 = vsel %vm998, 1, 0
        %v1063 = vsel %vm999, 1, 0
        %v1064 = vsel %vm1000, 1, 0
        %v1065 = vsel %vm1001, 1, 0
        %v1066 = vsel %vm1002, 1, 0
        %v1067 = vsel %vm1003, 1, 0
        %v1068 = vsel %vm1004, 1, 0
        %v1069 = vsel %vm1005, 1, 0
        %v1070 = vsel %vm1006, 1, 0
        %v1071 = vsel %vm1007, 1, 0
        %v1072 = vsel %vm1008, 1, 0
        %v1073 = vsel %vm1009, 1, 0
        %v1074 = vsel %vm1010, 1, 0
        %v1075 = vsel %vm1011, 1, 0
        %v1076 = vsel %vm1012, 1, 0
        %v1077 = vsel %vm1013, 1, 0
        %v1078 = vcvt.s32.f32 %v1014
        %v1079 = vcvt.s32.f32 %v1015
        %v1080 = vcvt.s32.f32 %v1016
        %v1081 = vcvt.s32.f32 %v1017
        %v1082 = vcvt.s32.f32 %v1018
        %v1083 = vcvt.s32.f32 %v1019
        %v1084 = vcvt.s32.f32 %v1020
        %v1085 = vcvt.s32.f32 %v1021
        %v1086 = vcvt.s32.f32 %v1022
        %v1087 = vcvt.s32.f32 %v1023
        %v1088 = vcvt.s32.f32 %v1024
        %v1089 = vcvt.s32.f32 %v1025
        %v1090 = vcvt.s32.f32 %v1026
        %v1091 = vcvt.s32.f32 %v1027
        %v1092 = vcvt.s32.f32 %v1028
        %v1093 = vcvt.s32.f32 %v1029
        %v1094 = vcvt.s32.f32 %v1030
        %v1095 = vcvt.s32.f32 %v1031
        %v1096 = vcvt.s32.f32 %v1032
        %v1097 = vcvt.s32.f32 %v1033
        %v1098 = vcvt.s32.f32 %v1034
        %v1099 = vcvt.s32.f32 %v1035
        %v1100 = vcvt.s32.f32 %v1036
        %v1101 = vcvt.s32.f32 %v1037
        %v1102 = vcvt.s32.f32 %v1038
        %v1103 = vcvt.s32.f32 %v1039
        %v1104 = vcvt.s32.f32 %v1040
        %v1105 = vcvt.s32.f32 %v1041
        %v1106 = vcvt.s32.f32 %v1042
        %v1107 = vcvt.s32.f32 %v1043
        %v1108 = vcvt.s32.f32 %v1044
        %v1109 = vcvt.s32.f32 %v1045
        %v1110 = vcvt.s32.f32 %v1046
        %v1111 = vcvt.s32.f32 %v1047
        %v1112 = vcvt.s32.f32 %v1048
        %v1113 = vcvt.s32.f32 %v1049
        %v1114 = vcvt.s32.f32 %v1050
        %v1115 = vcvt.s32.f32 %v1051
        %v1116 = vcvt.s32.f32 %v1052
        %v1117 = vcvt.s32.f32 %v1053
        %v1118 = vcvt.s32.f32 %v1054
        %v1119 = vcvt.s32.f32 %v1055
        %v1120 = vcvt.s32.f32 %v1056
        %v1121 = vcvt.s32.f32 %v1057
        %v1122 = vcvt.s32.f32 %v1058
        %v1123 = vcvt.s32.f32 %v1059
        %v1124 = vcvt.s32.f32 %v1060
        %v1125 = vcvt.s32.f32 %v1061
        %v1126 = vcvt.s32.f32 %v1062
        %v1127 = vcvt.s32.f32 %v1063
        %v1128 = vcvt.s32.f32 %v1064
        %v1129 = vcvt.s32.f32 %v1065
        %v1130 = vcvt.s32.f32 %v1066
        %v1131 = vcvt.s32.f32 %v1067
        %v1132 = vcvt.s32.f32 %v1068
        %v1133 = vcvt.s32.f32 %v1069
        %v1134 = vcvt.s32.f32 %v1070
        %v1135 = vcvt.s32.f32 %v1071
        %v1136 = vcvt.s32.f32 %v1072
        %v1137 = vcvt.s32.f32 %v1073
        %v1138 = vcvt.s32.f32 %v1074
        %v1139 = vcvt.s32.f32 %v1075
        %v1140 = vcvt.s32.f32 %v1076
        %v1141 = vcvt.s32.f32 %v1077
        %v1142 = vadd.f32 %v822, %v1078
        %v1143 = vadd.f32 %v823, %v1079
        %v1144 = vadd.f32 %v824, %v1080
        %v1145 = vadd.f32 %v825, %v1081
        %v1146 = vadd.f32 %v826, %v1082
        %v1147 = vadd.f32 %v827, %v1083
        %v1148 = vadd.f32 %v828, %v1084
        %v1149 = vadd.f32 %v829, %v1085
        %v1150 = vadd.f32 %v830, %v1086
        %v1151 = vadd.f32 %v831, %v1087
        %v1152 = vadd.f32 %v832, %v1088
        %v1153 = vadd.f32 %v833, %v1089
        %v1154 = vadd.f32 %v834, %v1090
        %v1155 = vadd.f32 %v835, %v1091
        %v1156 = vadd.f32 %v836, %v1092
        %v1157 = vadd.f32 %v837, %v1093
        %v1158 = vadd.f32 %v838, %v1094
        %v1159 = vadd.f32 %v839, %v1095
        %v1160 = vadd.f32 %v840, %v1096
        %v1161 = vadd.f32 %v841, %v1097
        %v1162 = vadd.f32 %v842, %v1098
        %v1163 = vadd.f32 %v843, %v1099
        %v1164 = vadd.f32 %v844, %v1100
        %v1165 = vadd.f32 %v845, %v1101
        %v1166 = vadd.f32 %v846, %v1102
        %v1167 = vadd.f32 %v847, %v1103
        %v1168 = vadd.f32 %v848, %v1104
        %v1169 = vadd.f32 %v849, %v1105
        %v1170 = vadd.f32 %v850, %v1106
        %v1171 = vadd.f32 %v851, %v1107
        %v1172 = vadd.f32 %v852, %v1108
        %v1173 = vadd.f32 %v853, %v1109
        %v1174 = vadd.f32 %v854, %v1110
        %v1175 = vadd.f32 %v855, %v1111
        %v1176 = vadd.f32 %v856, %v1112
        %v1177 = vadd.f32 %v857, %v1113
        %v1178 = vadd.f32 %v858, %v1114
        %v1179 = vadd.f32 %v859, %v1115
        %v1180 = vadd.f32 %v860, %v1116
        %v1181 = vadd.f32 %v861, %v1117
        %v1182 = vadd.f32 %v862, %v1118
        %v1183 = vadd.f32 %v863, %v1119
        %v1184 = vadd.f32 %v864, %v1120
        %v1185 = vadd.f32 %v865, %v1121
        %v1186 = vadd.f32 %v866, %v1122
        %v1187 = vadd.f32 %v867, %v1123
        %v1188 = vadd.f32 %v868, %v1124
        %v1189 = vadd.f32 %v869, %v1125
        %v1190 = vadd.f32 %v870, %v1126
        %v1191 = vadd.f32 %v871, %v1127
        %v1192 = vadd.f32 %v872, %v1128
        %v1193 = vadd.f32 %v873, %v1129
        %v1194 = vadd.f32 %v874, %v1130
        %v1195 = vadd.f32 %v875, %v1131
        %v1196 = vadd.f32 %v876, %v1132
        %v1197 = vadd.f32 %v877, %v1133
        %v1198 = vadd.f32 %v878, %v1134
        %v1199 = vadd.f32 %v879, %v1135
        %v1200 = vadd.f32 %v880, %v1136
        %v1201 = vadd.f32 %v881, %v1137
        %v1202 = vadd.f32 %v882, %v1138
        %v1203 = vadd.f32 %v883, %v1139
        %v1204 = vadd.f32 %v884, %v1140
        %v1205 = vadd.f32 %v885, %v1141
        %v1206 = vadd.s32 %v241, 384
        %v1207 = vadd.s32 %v242, 384
        %v1208 = vadd.s32 %v243, 384
        %v1209 = vadd.s32 %v244, 384
        %v1210 = vadd.s32 %v245, 384
        %v1211 = vadd.s32 %v246, 384
        %v1212 = vadd.s32 %v247, 384
        %v1213 = vadd.s32 %v248, 384
        %v1214 = vadd.s32 %v249, 384
        %v1215 = vadd.s32 %v250, 384
        %v1216 = vadd.s32 %v251, 384
        %v1217 = vadd.s32 %v252, 384
        %v1218 = vadd.s32 %v253, 384
        %v1219 = vadd.s32 %v254, 384
        %v1220 = vadd.s32 %v255, 384
        %v1221 = vadd.s32 %v256, 384
        %1222 = vset.pattern.permute.xlu0 3
        %1223 = vperm.xlu0 %1222, %v1206
        %v1224 = vpop.permute.xlu0 %1223
        %1225 = vset.pattern.permute.xlu0 3
        %1226 = vperm.xlu0 %1225, %v1207
        %v1227 = vpop.permute.xlu0 %1226
        %1228 = vset.pattern.permute.xlu0 3
        %1229 = vperm.xlu0 %1228, %v1208
        %v1230 = vpop.permute.xlu0 %1229
        %1231 = vset.pattern.permute.xlu0 3
        %1232 = vperm.xlu0 %1231, %v1209
        %v1233 = vpop.permute.xlu0 %1232
        %1234 = vset.pattern.permute.xlu0 3
        %1235 = vperm.xlu0 %1234, %v1210
        %v1236 = vpop.permute.xlu0 %1235
        %1237 = vset.pattern.permute.xlu0 3
        %1238 = vperm.xlu0 %1237, %v1211
        %v1239 = vpop.permute.xlu0 %1238
        %1240 = vset.pattern.permute.xlu0 3
        %1241 = vperm.xlu0 %1240, %v1212
        %v1242 = vpop.permute.xlu0 %1241
        %1243 = vset.pattern.permute.xlu0 3
        %1244 = vperm.xlu0 %1243, %v1213
        %v1245 = vpop.permute.xlu0 %1244
        %1246 = vset.pattern.permute.xlu0 3
        %1247 = vperm.xlu0 %1246, %v1214
        %v1248 = vpop.permute.xlu0 %1247
        %1249 = vset.pattern.permute.xlu0 3
        %1250 = vperm.xlu0 %1249, %v1215
        %v1251 = vpop.permute.xlu0 %1250
        %1252 = vset.pattern.permute.xlu0 3
        %1253 = vperm.xlu0 %1252, %v1216
        %v1254 = vpop.permute.xlu0 %1253
        %1255 = vset.pattern.permute.xlu0 3
        %1256 = vperm.xlu0 %1255, %v1217
        %v1257 = vpop.permute.xlu0 %1256
        %1258 = vset.pattern.permute.xlu0 3
        %1259 = vperm.xlu0 %1258, %v1218
        %v1260 = vpop.permute.xlu0 %1259
        %1261 = vset.pattern.permute.xlu0 3
        %1262 = vperm.xlu0 %1261, %v1219
        %v1263 = vpop.permute.xlu0 %1262
        %1264 = vset.pattern.permute.xlu0 3
        %1265 = vperm.xlu0 %1264, %v1220
        %v1266 = vpop.permute.xlu0 %1265
        %1267 = vset.pattern.permute.xlu0 3
        %1268 = vperm.xlu0 %1267, %v1221
        %v1269 = vpop.permute.xlu0 %1268
        %vm1270 = vcmp.eq.s32.totalorder %v258, %v1224
        %vm1271 = vcmp.eq.s32.totalorder %v259, %v1224
        %vm1272 = vcmp.eq.s32.totalorder %v260, %v1224
        %vm1273 = vcmp.eq.s32.totalorder %v261, %v1224
        %vm1274 = vcmp.eq.s32.totalorder %v258, %v1227
        %vm1275 = vcmp.eq.s32.totalorder %v259, %v1227
        %vm1276 = vcmp.eq.s32.totalorder %v260, %v1227
        %vm1277 = vcmp.eq.s32.totalorder %v261, %v1227
        %vm1278 = vcmp.eq.s32.totalorder %v258, %v1230
        %vm1279 = vcmp.eq.s32.totalorder %v259, %v1230
        %vm1280 = vcmp.eq.s32.totalorder %v260, %v1230
        %vm1281 = vcmp.eq.s32.totalorder %v261, %v1230
        %vm1282 = vcmp.eq.s32.totalorder %v258, %v1233
        %vm1283 = vcmp.eq.s32.totalorder %v259, %v1233
        %vm1284 = vcmp.eq.s32.totalorder %v260, %v1233
        %vm1285 = vcmp.eq.s32.totalorder %v261, %v1233
        %vm1286 = vcmp.eq.s32.totalorder %v258, %v1236
        %vm1287 = vcmp.eq.s32.totalorder %v259, %v1236
        %vm1288 = vcmp.eq.s32.totalorder %v260, %v1236
        %vm1289 = vcmp.eq.s32.totalorder %v261, %v1236
        %vm1290 = vcmp.eq.s32.totalorder %v258, %v1239
        %vm1291 = vcmp.eq.s32.totalorder %v259, %v1239
        %vm1292 = vcmp.eq.s32.totalorder %v260, %v1239
        %vm1293 = vcmp.eq.s32.totalorder %v261, %v1239
        %vm1294 = vcmp.eq.s32.totalorder %v258, %v1242
        %vm1295 = vcmp.eq.s32.totalorder %v259, %v1242
        %vm1296 = vcmp.eq.s32.totalorder %v260, %v1242
        %vm1297 = vcmp.eq.s32.totalorder %v261, %v1242
        %vm1298 = vcmp.eq.s32.totalorder %v258, %v1245
        %vm1299 = vcmp.eq.s32.totalorder %v259, %v1245
        %vm1300 = vcmp.eq.s32.totalorder %v260, %v1245
        %vm1301 = vcmp.eq.s32.totalorder %v261, %v1245
        %vm1302 = vcmp.eq.s32.totalorder %v258, %v1248
        %vm1303 = vcmp.eq.s32.totalorder %v259, %v1248
        %vm1304 = vcmp.eq.s32.totalorder %v260, %v1248
        %vm1305 = vcmp.eq.s32.totalorder %v261, %v1248
        %vm1306 = vcmp.eq.s32.totalorder %v258, %v1251
        %vm1307 = vcmp.eq.s32.totalorder %v259, %v1251
        %vm1308 = vcmp.eq.s32.totalorder %v260, %v1251
        %vm1309 = vcmp.eq.s32.totalorder %v261, %v1251
        %vm1310 = vcmp.eq.s32.totalorder %v258, %v1254
        %vm1311 = vcmp.eq.s32.totalorder %v259, %v1254
        %vm1312 = vcmp.eq.s32.totalorder %v260, %v1254
        %vm1313 = vcmp.eq.s32.totalorder %v261, %v1254
        %vm1314 = vcmp.eq.s32.totalorder %v258, %v1257
        %vm1315 = vcmp.eq.s32.totalorder %v259, %v1257
        %vm1316 = vcmp.eq.s32.totalorder %v260, %v1257
        %vm1317 = vcmp.eq.s32.totalorder %v261, %v1257
        %vm1318 = vcmp.eq.s32.totalorder %v258, %v1260
        %vm1319 = vcmp.eq.s32.totalorder %v259, %v1260
        %vm1320 = vcmp.eq.s32.totalorder %v260, %v1260
        %vm1321 = vcmp.eq.s32.totalorder %v261, %v1260
        %vm1322 = vcmp.eq.s32.totalorder %v258, %v1263
        %vm1323 = vcmp.eq.s32.totalorder %v259, %v1263
        %vm1324 = vcmp.eq.s32.totalorder %v260, %v1263
        %vm1325 = vcmp.eq.s32.totalorder %v261, %v1263
        %vm1326 = vcmp.eq.s32.totalorder %v258, %v1266
        %vm1327 = vcmp.eq.s32.totalorder %v259, %v1266
        %vm1328 = vcmp.eq.s32.totalorder %v260, %v1266
        %vm1329 = vcmp.eq.s32.totalorder %v261, %v1266
        %vm1330 = vcmp.eq.s32.totalorder %v258, %v1269
        %vm1331 = vcmp.eq.s32.totalorder %v259, %v1269
        %vm1332 = vcmp.eq.s32.totalorder %v260, %v1269
        %vm1333 = vcmp.eq.s32.totalorder %v261, %v1269
        %v1334 = vsel %vm1270, 1, 0
        %v1335 = vsel %vm1271, 1, 0
        %v1336 = vsel %vm1272, 1, 0
        %v1337 = vsel %vm1273, 1, 0
        %v1338 = vsel %vm1274, 1, 0
        %v1339 = vsel %vm1275, 1, 0
        %v1340 = vsel %vm1276, 1, 0
        %v1341 = vsel %vm1277, 1, 0
        %v1342 = vsel %vm1278, 1, 0
        %v1343 = vsel %vm1279, 1, 0
        %v1344 = vsel %vm1280, 1, 0
        %v1345 = vsel %vm1281, 1, 0
        %v1346 = vsel %vm1282, 1, 0
        %v1347 = vsel %vm1283, 1, 0
        %v1348 = vsel %vm1284, 1, 0
        %v1349 = vsel %vm1285, 1, 0
        %v1350 = vsel %vm1286, 1, 0
        %v1351 = vsel %vm1287, 1, 0
        %v1352 = vsel %vm1288, 1, 0
        %v1353 = vsel %vm1289, 1, 0
        %v1354 = vsel %vm1290, 1, 0
        %v1355 = vsel %vm1291, 1, 0
        %v1356 = vsel %vm1292, 1, 0
        %v1357 = vsel %vm1293, 1, 0
        %v1358 = vsel %vm1294, 1, 0
        %v1359 = vsel %vm1295, 1, 0
        %v1360 = vsel %vm1296, 1, 0
        %v1361 = vsel %vm1297, 1, 0
        %v1362 = vsel %vm1298, 1, 0
        %v1363 = vsel %vm1299, 1, 0
        %v1364 = vsel %vm1300, 1, 0
        %v1365 = vsel %vm1301, 1, 0
        %v1366 = vsel %vm1302, 1, 0
        %v1367 = vsel %vm1303, 1, 0
        %v1368 = vsel %vm1304, 1, 0
        %v1369 = vsel %vm1305, 1, 0
        %v1370 = vsel %vm1306, 1, 0
        %v1371 = vsel %vm1307, 1, 0
        %v1372 = vsel %vm1308, 1, 0
        %v1373 = vsel %vm1309, 1, 0
        %v1374 = vsel %vm1310, 1, 0
        %v1375 = vsel %vm1311, 1, 0
        %v1376 = vsel %vm1312, 1, 0
        %v1377 = vsel %vm1313, 1, 0
        %v1378 = vsel %vm1314, 1, 0
        %v1379 = vsel %vm1315, 1, 0
        %v1380 = vsel %vm1316, 1, 0
        %v1381 = vsel %vm1317, 1, 0
        %v1382 = vsel %vm1318, 1, 0
        %v1383 = vsel %vm1319, 1, 0
        %v1384 = vsel %vm1320, 1, 0
        %v1385 = vsel %vm1321, 1, 0
        %v1386 = vsel %vm1322, 1, 0
        %v1387 = vsel %vm1323, 1, 0
        %v1388 = vsel %vm1324, 1, 0
        %v1389 = vsel %vm1325, 1, 0
        %v1390 = vsel %vm1326, 1, 0
        %v1391 = vsel %vm1327, 1, 0
        %v1392 = vsel %vm1328, 1, 0
        %v1393 = vsel %vm1329, 1, 0
        %v1394 = vsel %vm1330, 1, 0
        %v1395 = vsel %vm1331, 1, 0
        %v1396 = vsel %vm1332, 1, 0
        %v1397 = vsel %vm1333, 1, 0
        %v1398 = vcvt.s32.f32 %v1334
        %v1399 = vcvt.s32.f32 %v1335
        %v1400 = vcvt.s32.f32 %v1336
        %v1401 = vcvt.s32.f32 %v1337
        %v1402 = vcvt.s32.f32 %v1338
        %v1403 = vcvt.s32.f32 %v1339
        %v1404 = vcvt.s32.f32 %v1340
        %v1405 = vcvt.s32.f32 %v1341
        %v1406 = vcvt.s32.f32 %v1342
        %v1407 = vcvt.s32.f32 %v1343
        %v1408 = vcvt.s32.f32 %v1344
        %v1409 = vcvt.s32.f32 %v1345
        %v1410 = vcvt.s32.f32 %v1346
        %v1411 = vcvt.s32.f32 %v1347
        %v1412 = vcvt.s32.f32 %v1348
        %v1413 = vcvt.s32.f32 %v1349
        %v1414 = vcvt.s32.f32 %v1350
        %v1415 = vcvt.s32.f32 %v1351
        %v1416 = vcvt.s32.f32 %v1352
        %v1417 = vcvt.s32.f32 %v1353
        %v1418 = vcvt.s32.f32 %v1354
        %v1419 = vcvt.s32.f32 %v1355
        %v1420 = vcvt.s32.f32 %v1356
        %v1421 = vcvt.s32.f32 %v1357
        %v1422 = vcvt.s32.f32 %v1358
        %v1423 = vcvt.s32.f32 %v1359
        %v1424 = vcvt.s32.f32 %v1360
        %v1425 = vcvt.s32.f32 %v1361
        %v1426 = vcvt.s32.f32 %v1362
        %v1427 = vcvt.s32.f32 %v1363
        %v1428 = vcvt.s32.f32 %v1364
        %v1429 = vcvt.s32.f32 %v1365
        %v1430 = vcvt.s32.f32 %v1366
        %v1431 = vcvt.s32.f32 %v1367
        %v1432 = vcvt.s32.f32 %v1368
        %v1433 = vcvt.s32.f32 %v1369
        %v1434 = vcvt.s32.f32 %v1370
        %v1435 = vcvt.s32.f32 %v1371
        %v1436 = vcvt.s32.f32 %v1372
        %v1437 = vcvt.s32.f32 %v1373
        %v1438 = vcvt.s32.f32 %v1374
        %v1439 = vcvt.s32.f32 %v1375
        %v1440 = vcvt.s32.f32 %v1376
        %v1441 = vcvt.s32.f32 %v1377
        %v1442 = vcvt.s32.f32 %v1378
        %v1443 = vcvt.s32.f32 %v1379
        %v1444 = vcvt.s32.f32 %v1380
        %v1445 = vcvt.s32.f32 %v1381
        %v1446 = vcvt.s32.f32 %v1382
        %v1447 = vcvt.s32.f32 %v1383
        %v1448 = vcvt.s32.f32 %v1384
        %v1449 = vcvt.s32.f32 %v1385
        %v1450 = vcvt.s32.f32 %v1386
        %v1451 = vcvt.s32.f32 %v1387
        %v1452 = vcvt.s32.f32 %v1388
        %v1453 = vcvt.s32.f32 %v1389
        %v1454 = vcvt.s32.f32 %v1390
        %v1455 = vcvt.s32.f32 %v1391
        %v1456 = vcvt.s32.f32 %v1392
        %v1457 = vcvt.s32.f32 %v1393
        %v1458 = vcvt.s32.f32 %v1394
        %v1459 = vcvt.s32.f32 %v1395
        %v1460 = vcvt.s32.f32 %v1396
        %v1461 = vcvt.s32.f32 %v1397
        %v1462 = vadd.f32 %v1142, %v1398
        %v1463 = vadd.f32 %v1143, %v1399
        %v1464 = vadd.f32 %v1144, %v1400
        %v1465 = vadd.f32 %v1145, %v1401
        %v1466 = vadd.f32 %v1146, %v1402
        %v1467 = vadd.f32 %v1147, %v1403
        %v1468 = vadd.f32 %v1148, %v1404
        %v1469 = vadd.f32 %v1149, %v1405
        %v1470 = vadd.f32 %v1150, %v1406
        %v1471 = vadd.f32 %v1151, %v1407
        %v1472 = vadd.f32 %v1152, %v1408
        %v1473 = vadd.f32 %v1153, %v1409
        %v1474 = vadd.f32 %v1154, %v1410
        %v1475 = vadd.f32 %v1155, %v1411
        %v1476 = vadd.f32 %v1156, %v1412
        %v1477 = vadd.f32 %v1157, %v1413
        %v1478 = vadd.f32 %v1158, %v1414
        %v1479 = vadd.f32 %v1159, %v1415
        %v1480 = vadd.f32 %v1160, %v1416
        %v1481 = vadd.f32 %v1161, %v1417
        %v1482 = vadd.f32 %v1162, %v1418
        %v1483 = vadd.f32 %v1163, %v1419
        %v1484 = vadd.f32 %v1164, %v1420
        %v1485 = vadd.f32 %v1165, %v1421
        %v1486 = vadd.f32 %v1166, %v1422
        %v1487 = vadd.f32 %v1167, %v1423
        %v1488 = vadd.f32 %v1168, %v1424
        %v1489 = vadd.f32 %v1169, %v1425
        %v1490 = vadd.f32 %v1170, %v1426
        %v1491 = vadd.f32 %v1171, %v1427
        %v1492 = vadd.f32 %v1172, %v1428
        %v1493 = vadd.f32 %v1173, %v1429
        %v1494 = vadd.f32 %v1174, %v1430
        %v1495 = vadd.f32 %v1175, %v1431
        %v1496 = vadd.f32 %v1176, %v1432
        %v1497 = vadd.f32 %v1177, %v1433
        %v1498 = vadd.f32 %v1178, %v1434
        %v1499 = vadd.f32 %v1179, %v1435
        %v1500 = vadd.f32 %v1180, %v1436
        %v1501 = vadd.f32 %v1181, %v1437
        %v1502 = vadd.f32 %v1182, %v1438
        %v1503 = vadd.f32 %v1183, %v1439
        %v1504 = vadd.f32 %v1184, %v1440
        %v1505 = vadd.f32 %v1185, %v1441
        %v1506 = vadd.f32 %v1186, %v1442
        %v1507 = vadd.f32 %v1187, %v1443
        %v1508 = vadd.f32 %v1188, %v1444
        %v1509 = vadd.f32 %v1189, %v1445
        %v1510 = vadd.f32 %v1190, %v1446
        %v1511 = vadd.f32 %v1191, %v1447
        %v1512 = vadd.f32 %v1192, %v1448
        %v1513 = vadd.f32 %v1193, %v1449
        %v1514 = vadd.f32 %v1194, %v1450
        %v1515 = vadd.f32 %v1195, %v1451
        %v1516 = vadd.f32 %v1196, %v1452
        %v1517 = vadd.f32 %v1197, %v1453
        %v1518 = vadd.f32 %v1198, %v1454
        %v1519 = vadd.f32 %v1199, %v1455
        %v1520 = vadd.f32 %v1200, %v1456
        %v1521 = vadd.f32 %v1201, %v1457
        %v1522 = vadd.f32 %v1202, %v1458
        %v1523 = vadd.f32 %v1203, %v1459
        %v1524 = vadd.f32 %v1204, %v1460
        %v1525 = vadd.f32 %v1205, %v1461
        %v1526 = vld [vmem:[#allocation2] sm:$0xff]
        %v1527 = vld [vmem:[#allocation2 + $0x8] sm:$0xff]
        %v1528 = vld [vmem:[#allocation2 + $0x10] sm:$0xff]
        %v1529 = vld [vmem:[#allocation2 + $0x18] sm:$0xff]
        %v1530 = vld [vmem:[#allocation2 + $0x20] sm:$0xff]
        %v1531 = vld [vmem:[#allocation2 + $0x28] sm:$0xff]
        %v1532 = vld [vmem:[#allocation2 + $0x30] sm:$0xff]
        %v1533 = vld [vmem:[#allocation2 + $0x38] sm:$0xff]
        %v1534 = vld [vmem:[#allocation2 + $0x40] sm:$0xff]
        %v1535 = vld [vmem:[#allocation2 + $0x48] sm:$0xff]
        %v1536 = vld [vmem:[#allocation2 + $0x50] sm:$0xff]
        %v1537 = vld [vmem:[#allocation2 + $0x58] sm:$0xff]
        %v1538 = vld [vmem:[#allocation2 + $0x60] sm:$0xff]
        %v1539 = vld [vmem:[#allocation2 + $0x68] sm:$0xff]
        %v1540 = vld [vmem:[#allocation2 + $0x70] sm:$0xff]
        %v1541 = vld [vmem:[#allocation2 + $0x78] sm:$0xff]
        %v1542 = vld [vmem:[#allocation2 + $0x80] sm:$0xff]
        %v1543 = vld [vmem:[#allocation2 + $0x88] sm:$0xff]
        %v1544 = vld [vmem:[#allocation2 + $0x90] sm:$0xff]
        %v1545 = vld [vmem:[#allocation2 + $0x98] sm:$0xff]
        %v1546 = vld [vmem:[#allocation2 + $0xa0] sm:$0xff]
        %v1547 = vld [vmem:[#allocation2 + $0xa8] sm:$0xff]
        %v1548 = vld [vmem:[#allocation2 + $0xb0] sm:$0xff]
        %v1549 = vld [vmem:[#allocation2 + $0xb8] sm:$0xff]
        %v1550 = vld [vmem:[#allocation2 + $0xc0] sm:$0xff]
        %v1551 = vld [vmem:[#allocation2 + $0xc8] sm:$0xff]
        %v1552 = vld [vmem:[#allocation2 + $0xd0] sm:$0xff]
        %v1553 = vld [vmem:[#allocation2 + $0xd8] sm:$0xff]
        %v1554 = vld [vmem:[#allocation2 + $0xe0] sm:$0xff]
        %v1555 = vld [vmem:[#allocation2 + $0xe8] sm:$0xff]
        %v1556 = vld [vmem:[#allocation2 + $0xf0] sm:$0xff]
        %v1557 = vld [vmem:[#allocation2 + $0xf8] sm:$0xff]
        %v1558 = vld [vmem:[#allocation2 + $0x100] sm:$0xff]
        %v1559 = vld [vmem:[#allocation2 + $0x108] sm:$0xff]
        %v1560 = vld [vmem:[#allocation2 + $0x110] sm:$0xff]
        %v1561 = vld [vmem:[#allocation2 + $0x118] sm:$0xff]
        %v1562 = vld [vmem:[#allocation2 + $0x120] sm:$0xff]
        %v1563 = vld [vmem:[#allocation2 + $0x128] sm:$0xff]
        %v1564 = vld [vmem:[#allocation2 + $0x130] sm:$0xff]
        %v1565 = vld [vmem:[#allocation2 + $0x138] sm:$0xff]
        %v1566 = vld [vmem:[#allocation2 + $0x140] sm:$0xff]
        %v1567 = vld [vmem:[#allocation2 + $0x148] sm:$0xff]
        %v1568 = vld [vmem:[#allocation2 + $0x150] sm:$0xff]
        %v1569 = vld [vmem:[#allocation2 + $0x158] sm:$0xff]
        %v1570 = vld [vmem:[#allocation2 + $0x160] sm:$0xff]
        %v1571 = vld [vmem:[#allocation2 + $0x168] sm:$0xff]
        %v1572 = vld [vmem:[#allocation2 + $0x170] sm:$0xff]
        %v1573 = vld [vmem:[#allocation2 + $0x178] sm:$0xff]
        %v1574 = vld [vmem:[#allocation2 + $0x180] sm:$0xff]
        %v1575 = vld [vmem:[#allocation2 + $0x188] sm:$0xff]
        %v1576 = vld [vmem:[#allocation2 + $0x190] sm:$0xff]
        %v1577 = vld [vmem:[#allocation2 + $0x198] sm:$0xff]
        %v1578 = vld [vmem:[#allocation2 + $0x1a0] sm:$0xff]
        %v1579 = vld [vmem:[#allocation2 + $0x1a8] sm:$0xff]
        %v1580 = vld [vmem:[#allocation2 + $0x1b0] sm:$0xff]
        %v1581 = vld [vmem:[#allocation2 + $0x1b8] sm:$0xff]
        %v1582 = vld [vmem:[#allocation2 + $0x1c0] sm:$0xff]
        %v1583 = vld [vmem:[#allocation2 + $0x1c8] sm:$0xff]
        %v1584 = vld [vmem:[#allocation2 + $0x1d0] sm:$0xff]
        %v1585 = vld [vmem:[#allocation2 + $0x1d8] sm:$0xff]
        %v1586 = vld [vmem:[#allocation2 + $0x1e0] sm:$0xff]
        %v1587 = vld [vmem:[#allocation2 + $0x1e8] sm:$0xff]
        %v1588 = vld [vmem:[#allocation2 + $0x1f0] sm:$0xff]
        %v1589 = vld [vmem:[#allocation2 + $0x1f8] sm:$0xff]
        %v1590 = vld [vmem:[%s2] sm:$0x1]
        %v1592 = vlaneseq
        %v1593 = vshrl.u32 %v1592, 7
        %v1594 = vsub.s32 0, %v1593
        %v1595 = vrot.slane %v1590, %v1594
        %1597 = vmatprep.subr.mxu0 0.0
        %1598 = vmatpush1.msra.mxu0 %v1526
        %1599 = vmatprep.subr.mxu0 0.0
        %1600 = vmatpush1.msra.mxu0 %v1527
        %1601 = vmatprep.subr.mxu0 0.0
        %1602 = vmatpush1.msra.mxu0 %v1528
        %1603 = vmatprep.subr.mxu0 0.0
        %1604 = vmatpush1.msra.mxu0 %v1529
        %1605 = vmatprep.subr.mxu0 0.0
        %1606 = vmatpush1.msra.mxu0 %v1530
        %1607 = vmatprep.subr.mxu0 0.0
        %1608 = vmatpush1.msra.mxu0 %v1531
        %1609 = vmatprep.subr.mxu0 0.0
        %1610 = vmatpush1.msra.mxu0 %v1532
        %1611 = vmatprep.subr.mxu0 0.0
        %1612 = vmatpush1.msra.mxu0 %v1533
        %1613 = vmatprep.subr.mxu0 0.0
        %1614 = vmatpush1.msra.mxu0 %v1534
        %1615 = vmatprep.subr.mxu0 0.0
        %1616 = vmatpush1.msra.mxu0 %v1535
        %1617 = vmatprep.subr.mxu0 0.0
        %1618 = vmatpush1.msra.mxu0 %v1536
        %1619 = vmatprep.subr.mxu0 0.0
        %1620 = vmatpush1.msra.mxu0 %v1537
        %1621 = vmatprep.subr.mxu0 0.0
        %1622 = vmatpush1.msra.mxu0 %v1538
        %1623 = vmatprep.subr.mxu0 0.0
        %1624 = vmatpush1.msra.mxu0 %v1539
        %1625 = vmatprep.subr.mxu0 0.0
        %1626 = vmatpush1.msra.mxu0 %v1540
        %1627 = vmatprep.subr.mxu0 0.0
        %1628 = vmatpush1.msra.mxu0 %v1541
        %1629 = vmatprep.subr.mxu0 0.0
        %1630 = vmatpush1.msra.mxu0 %v1542
        %1631 = vmatprep.subr.mxu0 0.0
        %1632 = vmatpush1.msra.mxu0 %v1543
        %1633 = vmatprep.subr.mxu0 0.0
        %1634 = vmatpush1.msra.mxu0 %v1544
        %1635 = vmatprep.subr.mxu0 0.0
        %1636 = vmatpush1.msra.mxu0 %v1545
        %1637 = vmatprep.subr.mxu0 0.0
        %1638 = vmatpush1.msra.mxu0 %v1546
        %1639 = vmatprep.subr.mxu0 0.0
        %1640 = vmatpush1.msra.mxu0 %v1547
        %1641 = vmatprep.subr.mxu0 0.0
        %1642 = vmatpush1.msra.mxu0 %v1548
        %1643 = vmatprep.subr.mxu0 0.0
        %1644 = vmatpush1.msra.mxu0 %v1549
        %1645 = vmatprep.subr.mxu0 0.0
        %1646 = vmatpush1.msra.mxu0 %v1550
        %1647 = vmatprep.subr.mxu0 0.0
        %1648 = vmatpush1.msra.mxu0 %v1551
        %1649 = vmatprep.subr.mxu0 0.0
        %1650 = vmatpush1.msra.mxu0 %v1552
        %1651 = vmatprep.subr.mxu0 0.0
        %1652 = vmatpush1.msra.mxu0 %v1553
        %1653 = vmatprep.subr.mxu0 0.0
        %1654 = vmatpush1.msra.mxu0 %v1554
        %1655 = vmatprep.subr.mxu0 0.0
        %1656 = vmatpush1.msra.mxu0 %v1555
        %1657 = vmatprep.subr.mxu0 0.0
        %1658 = vmatpush1.msra.mxu0 %v1556
        %1659 = vmatprep.subr.mxu0 0.0
        %1660 = vmatpush1.msra.mxu0 %v1557
        %1661 = vmatprep.mubr.f32.mxu0 %v1463
        %1662 = vmatmul.mubr.f32.gmra.mrb[0].mxu0 %v1462
        %v1663 = vpop.f32.mrb[0].mxu0
        %v1664 = vadd.f32 %v1595, %v1663
        %v1665 = vpop.f32.mrb[0].mxu0
        %1666 = vmatprep.mubr.f32.mxu0 %v1467
        %1667 = vmatmul.mubr.f32.gmra.mrb[0].mxu0 %v1466
        %v1668 = vpop.f32.mrb[0].mxu0
        %v1669 = vadd.f32 %v1595, %v1668
        %v1670 = vpop.f32.mrb[0].mxu0
        %1671 = vmatprep.mubr.f32.mxu0 %v1471
        %1672 = vmatmul.mubr.f32.gmra.mrb[0].mxu0 %v1470
        %v1673 = vpop.f32.mrb[0].mxu0
        %v1674 = vadd.f32 %v1595, %v1673
        %v1675 = vpop.f32.mrb[0].mxu0
        %1676 = vmatprep.mubr.f32.mxu0 %v1475
        %1677 = vmatmul.mubr.f32.gmra.mrb[0].mxu0 %v1474
        %v1678 = vpop.f32.mrb[0].mxu0
        %v1679 = vadd.f32 %v1595, %v1678
        %v1680 = vpop.f32.mrb[0].mxu0
        %1681 = vmatprep.mubr.f32.mxu0 %v1479
        %1682 = vmatmul.mubr.f32.gmra.mrb[0].mxu0 %v1478
        %v1683 = vpop.f32.mrb[0].mxu0
        %v1684 = vadd.f32 %v1595, %v1683
        %v1685 = vpop.f32.mrb[0].mxu0
        %1686 = vmatprep.mubr.f32.mxu0 %v1483
        %1687 = vmatmul.mubr.f32.gmra.mrb[0].mxu0 %v1482
        %v1688 = vpop.f32.mrb[0].mxu0
        %v1689 = vadd.f32 %v1595, %v1688
        %v1690 = vpop.f32.mrb[0].mxu0
        %1691 = vmatprep.mubr.f32.mxu0 %v1487
        %1692 = vmatmul.mubr.f32.gmra.mrb[0].mxu0 %v1486
        %v1693 = vpop.f32.mrb[0].mxu0
        %v1694 = vadd.f32 %v1595, %v1693
        %v1695 = vpop.f32.mrb[0].mxu0
        %1696 = vmatprep.mubr.f32.mxu0 %v1491
        %1697 = vmatmul.mubr.f32.gmra.mrb[0].mxu0 %v1490
        %v1698 = vpop.f32.mrb[0].mxu0
        %v1699 = vadd.f32 %v1595, %v1698
        %v1700 = vpop.f32.mrb[0].mxu0
        %1701 = vmatprep.mubr.f32.mxu0 %v1495
        %1702 = vmatmul.mubr.f32.gmra.mrb[0].mxu0 %v1494
        %v1703 = vpop.f32.mrb[0].mxu0
        %v1704 = vadd.f32 %v1595, %v1703
        %v1705 = vpop.f32.mrb[0].mxu0
        %1706 = vmatprep.mubr.f32.mxu0 %v1499
        %1707 = vmatmul.mubr.f32.gmra.mrb[0].mxu0 %v1498
        %v1708 = vpop.f32.mrb[0].mxu0
        %v1709 = vadd.f32 %v1595, %v1708
        %v1710 = vpop.f32.mrb[0].mxu0
        %1711 = vmatprep.mubr.f32.mxu0 %v1503
        %1712 = vmatmul.mubr.f32.gmra.mrb[0].mxu0 %v1502
        %v1713 = vpop.f32.mrb[0].mxu0
        %v1714 = vadd.f32 %v1595, %v1713
        %v1715 = vpop.f32.mrb[0].mxu0
        %1716 = vmatprep.mubr.f32.mxu0 %v1507
        %1717 = vmatmul.mubr.f32.gmra.mrb[0].mxu0 %v1506
        %v1718 = vpop.f32.mrb[0].mxu0
        %v1719 = vadd.f32 %v1595, %v1718
        %v1720 = vpop.f32.mrb[0].mxu0
        %1721 = vmatprep.mubr.f32.mxu0 %v1511
        %1722 = vmatmul.mubr.f32.gmra.mrb[0].mxu0 %v1510
        %v1723 = vpop.f32.mrb[0].mxu0
        %v1724 = vadd.f32 %v1595, %v1723
        %v1725 = vpop.f32.mrb[0].mxu0
        %1726 = vmatprep.mubr.f32.mxu0 %v1515
        %1727 = vmatmul.mubr.f32.gmra.mrb[0].mxu0 %v1514
        %v1728 = vpop.f32.mrb[0].mxu0
        %v1729 = vadd.f32 %v1595, %v1728
        %v1730 = vpop.f32.mrb[0].mxu0
        %1731 = vmatprep.mubr.f32.mxu0 %v1519
        %1732 = vmatmul.mubr.f32.gmra.mrb[0].mxu0 %v1518
        %v1733 = vpop.f32.mrb[0].mxu0
        %v1734 = vadd.f32 %v1595, %v1733
        %v1735 = vpop.f32.mrb[0].mxu0
        %1736 = vmatprep.mubr.f32.mxu0 %v1523
        %1737 = vmatmul.mubr.f32.gmra.mrb[0].mxu0 %v1522
        %v1738 = vpop.f32.mrb[0].mxu0
        %v1739 = vadd.f32 %v1595, %v1738
        %v1740 = vpop.f32.mrb[0].mxu0
        %1741 = vdwg.mxu0
        %1742 = vmatprep.subr.mxu0 0.0
        %1743 = vmatpush1.msra.mxu0 %v1558
        %1744 = vmatprep.subr.mxu0 0.0
        %1745 = vmatpush1.msra.mxu0 %v1559
        %1746 = vmatprep.subr.mxu0 0.0
        %1747 = vmatpush1.msra.mxu0 %v1560
        %1748 = vmatprep.subr.mxu0 0.0
        %1749 = vmatpush1.msra.mxu0 %v1561
        %1750 = vmatprep.subr.mxu0 0.0
        %1751 = vmatpush1.msra.mxu0 %v1562
        %1752 = vmatprep.subr.mxu0 0.0
        %1753 = vmatpush1.msra.mxu0 %v1563
        %1754 = vmatprep.subr.mxu0 0.0
        %1755 = vmatpush1.msra.mxu0 %v1564
        %1756 = vmatprep.subr.mxu0 0.0
        %1757 = vmatpush1.msra.mxu0 %v1565
        %1758 = vmatprep.subr.mxu0 0.0
        %1759 = vmatpush1.msra.mxu0 %v1566
        %1760 = vmatprep.subr.mxu0 0.0
        %1761 = vmatpush1.msra.mxu0 %v1567
        %1762 = vmatprep.subr.mxu0 0.0
        %1763 = vmatpush1.msra.mxu0 %v1568
        %1764 = vmatprep.subr.mxu0 0.0
        %1765 = vmatpush1.msra.mxu0 %v1569
        %1766 = vmatprep.subr.mxu0 0.0
        %1767 = vmatpush1.msra.mxu0 %v1570
        %1768 = vmatprep.subr.mxu0 0.0
        %1769 = vmatpush1.msra.mxu0 %v1571
        %1770 = vmatprep.subr.mxu0 0.0
        %1771 = vmatpush1.msra.mxu0 %v1572
        %1772 = vmatprep.subr.mxu0 0.0
        %1773 = vmatpush1.msra.mxu0 %v1573
        %1774 = vmatprep.subr.mxu0 0.0
        %1775 = vmatpush1.msra.mxu0 %v1574
        %1776 = vmatprep.subr.mxu0 0.0
        %1777 = vmatpush1.msra.mxu0 %v1575
        %1778 = vmatprep.subr.mxu0 0.0
        %1779 = vmatpush1.msra.mxu0 %v1576
        %1780 = vmatprep.subr.mxu0 0.0
        %1781 = vmatpush1.msra.mxu0 %v1577
        %1782 = vmatprep.subr.mxu0 0.0
        %1783 = vmatpush1.msra.mxu0 %v1578
        %1784 = vmatprep.subr.mxu0 0.0
        %1785 = vmatpush1.msra.mxu0 %v1579
        %1786 = vmatprep.subr.mxu0 0.0
        %1787 = vmatpush1.msra.mxu0 %v1580
        %1788 = vmatprep.subr.mxu0 0.0
        %1789 = vmatpush1.msra.mxu0 %v1581
        %1790 = vmatprep.subr.mxu0 0.0
        %1791 = vmatpush1.msra.mxu0 %v1582
        %1792 = vmatprep.subr.mxu0 0.0
        %1793 = vmatpush1.msra.mxu0 %v1583
        %1794 = vmatprep.subr.mxu0 0.0
        %1795 = vmatpush1.msra.mxu0 %v1584
        %1796 = vmatprep.subr.mxu0 0.0
        %1797 = vmatpush1.msra.mxu0 %v1585
        %1798 = vmatprep.subr.mxu0 0.0
        %1799 = vmatpush1.msra.mxu0 %v1586
        %1800 = vmatprep.subr.mxu0 0.0
        %1801 = vmatpush1.msra.mxu0 %v1587
        %1802 = vmatprep.subr.mxu0 0.0
        %1803 = vmatpush1.msra.mxu0 %v1588
        %1804 = vmatprep.subr.mxu0 0.0
        %1805 = vmatpush1.msra.mxu0 %v1589
        %1806 = vmatprep.mubr.f32.mxu0 %v1465
        %1807 = vmatmul.mubr.f32.gmra.mrb[0].mxu0 %v1464
        %v1808 = vpop.f32.mrb[0].mxu0
        %v1809 = vadd.f32 %v1664, %v1808
        %v1810 = vpop.f32.mrb[0].mxu0
        %1811 = vmatprep.mubr.f32.mxu0 %v1469
        %1812 = vmatmul.mubr.f32.gmra.mrb[0].mxu0 %v1468
        %v1813 = vpop.f32.mrb[0].mxu0
        %v1814 = vadd.f32 %v1669, %v1813
        %v1815 = vpop.f32.mrb[0].mxu0
        %1816 = vmatprep.mubr.f32.mxu0 %v1473
        %1817 = vmatmul.mubr.f32.gmra.mrb[0].mxu0 %v1472
        %v1818 = vpop.f32.mrb[0].mxu0
        %v1819 = vadd.f32 %v1674, %v1818
        %v1820 = vpop.f32.mrb[0].mxu0
        %1821 = vmatprep.mubr.f32.mxu0 %v1477
        %1822 = vmatmul.mubr.f32.gmra.mrb[0].mxu0 %v1476
        %v1823 = vpop.f32.mrb[0].mxu0
        %v1824 = vadd.f32 %v1679, %v1823
        %v1825 = vpop.f32.mrb[0].mxu0
        %1826 = vmatprep.mubr.f32.mxu0 %v1481
        %1827 = vmatmul.mubr.f32.gmra.mrb[0].mxu0 %v1480
        %v1828 = vpop.f32.mrb[0].mxu0
        %v1829 = vadd.f32 %v1684, %v1828
        %v1830 = vpop.f32.mrb[0].mxu0
        %1831 = vmatprep.mubr.f32.mxu0 %v1485
        %1832 = vmatmul.mubr.f32.gmra.mrb[0].mxu0 %v1484
        %v1833 = vpop.f32.mrb[0].mxu0
        %v1834 = vadd.f32 %v1689, %v1833
        %v1835 = vpop.f32.mrb[0].mxu0
        %1836 = vmatprep.mubr.f32.mxu0 %v1489
        %1837 = vmatmul.mubr.f32.gmra.mrb[0].mxu0 %v1488
        %v1838 = vpop.f32.mrb[0].mxu0
        %v1839 = vadd.f32 %v1694, %v1838
        %v1840 = vpop.f32.mrb[0].mxu0
        %1841 = vmatprep.mubr.f32.mxu0 %v1493
        %1842 = vmatmul.mubr.f32.gmra.mrb[0].mxu0 %v1492
        %v1843 = vpop.f32.mrb[0].mxu0
        %v1844 = vadd.f32 %v1699, %v1843
        %v1845 = vpop.f32.mrb[0].mxu0
        %1846 = vmatprep.mubr.f32.mxu0 %v1497
        %1847 = vmatmul.mubr.f32.gmra.mrb[0].mxu0 %v1496
        %v1848 = vpop.f32.mrb[0].mxu0
        %v1849 = vadd.f32 %v1704, %v1848
        %v1850 = vpop.f32.mrb[0].mxu0
        %1851 = vmatprep.mubr.f32.mxu0 %v1501
        %1852 = vmatmul.mubr.f32.gmra.mrb[0].mxu0 %v1500
        %v1853 = vpop.f32.mrb[0].mxu0
        %v1854 = vadd.f32 %v1709, %v1853
        %v1855 = vpop.f32.mrb[0].mxu0
        %1856 = vmatprep.mubr.f32.mxu0 %v1505
        %1857 = vmatmul.mubr.f32.gmra.mrb[0].mxu0 %v1504
        %v1858 = vpop.f32.mrb[0].mxu0
        %v1859 = vadd.f32 %v1714, %v1858
        %v1860 = vpop.f32.mrb[0].mxu0
        %1861 = vmatprep.mubr.f32.mxu0 %v1509
        %1862 = vmatmul.mubr.f32.gmra.mrb[0].mxu0 %v1508
        %v1863 = vpop.f32.mrb[0].mxu0
        %v1864 = vadd.f32 %v1719, %v1863
        %v1865 = vpop.f32.mrb[0].mxu0
        %1866 = vmatprep.mubr.f32.mxu0 %v1513
        %1867 = vmatmul.mubr.f32.gmra.mrb[0].mxu0 %v1512
        %v1868 = vpop.f32.mrb[0].mxu0
        %v1869 = vadd.f32 %v1724, %v1868
        %v1870 = vpop.f32.mrb[0].mxu0
        %1871 = vmatprep.mubr.f32.mxu0 %v1517
        %1872 = vmatmul.mubr.f32.gmra.mrb[0].mxu0 %v1516
        %v1873 = vpop.f32.mrb[0].mxu0
        %v1874 = vadd.f32 %v1729, %v1873
        %v1875 = vpop.f32.mrb[0].mxu0
        %1876 = vmatprep.mubr.f32.mxu0 %v1521
        %1877 = vmatmul.mubr.f32.gmra.mrb[0].mxu0 %v1520
        %v1878 = vpop.f32.mrb[0].mxu0
        %v1879 = vadd.f32 %v1734, %v1878
        %v1880 = vpop.f32.mrb[0].mxu0
        %1881 = vmatprep.mubr.f32.mxu0 %v1525
        %1882 = vmatmul.mubr.f32.gmra.mrb[0].mxu0 %v1524
        %v1883 = vpop.f32.mrb[0].mxu0
        %v1884 = vadd.f32 %v1739, %v1883
        %v1885 = vpop.f32.mrb[0].mxu0
        %1886 = vdwg.mxu0
        %v1887 = vmax.f32 %v1809, 0.0
        %v1888 = vmax.f32 %v1814, 0.0
        %v1889 = vmax.f32 %v1819, 0.0
        %v1890 = vmax.f32 %v1824, 0.0
        %v1891 = vmax.f32 %v1829, 0.0
        %v1892 = vmax.f32 %v1834, 0.0
        %v1893 = vmax.f32 %v1839, 0.0
        %v1894 = vmax.f32 %v1844, 0.0
        %v1895 = vmax.f32 %v1849, 0.0
        %v1896 = vmax.f32 %v1854, 0.0
        %v1897 = vmax.f32 %v1859, 0.0
        %v1898 = vmax.f32 %v1864, 0.0
        %v1899 = vmax.f32 %v1869, 0.0
        %v1900 = vmax.f32 %v1874, 0.0
        %v1901 = vmax.f32 %v1879, 0.0
        %v1902 = vmax.f32 %v1884, 0.0
        %v1903 = vld [vmem:[%s3] sm:$0xff]
        %v1904 = vld [vmem:[%s3 + $0x8] sm:$0xff]
        %v1905 = vld [vmem:[%s3 + $0x10] sm:$0xff]
        %v1906 = vld [vmem:[%s3 + $0x18] sm:$0xff]
        %v1907 = vld [vmem:[%s3 + $0x20] sm:$0xff]
        %v1908 = vld [vmem:[%s3 + $0x28] sm:$0xff]
        %v1909 = vld [vmem:[%s3 + $0x30] sm:$0xff]
        %v1910 = vld [vmem:[%s3 + $0x38] sm:$0xff]
        %v1911 = vld [vmem:[%s3 + $0x40] sm:$0xff]
        %v1912 = vld [vmem:[%s3 + $0x48] sm:$0xff]
        %v1913 = vld [vmem:[%s3 + $0x50] sm:$0xff]
        %v1914 = vld [vmem:[%s3 + $0x58] sm:$0xff]
        %v1915 = vld [vmem:[%s3 + $0x60] sm:$0xff]
        %v1916 = vld [vmem:[%s3 + $0x68] sm:$0xff]
        %v1917 = vld [vmem:[%s3 + $0x70] sm:$0xff]
        %v1918 = vld [vmem:[%s3 + $0x78] sm:$0xff]
        %v1919 = vld [vmem:[%s4] sm:$0x1]
        %v1921 = vlaneseq
        %v1922 = vshrl.u32 %v1921, 7
        %v1923 = vsub.s32 0, %v1922
        %v1924 = vrot.slane %v1919, %v1923
        %1926 = vmatprep.subr.mxu0 0.0
        %1927 = vmatpush1.msra.mxu0 %v1903
        %1928 = vmatprep.subr.mxu0 0.0
        %1929 = vmatpush1.msra.mxu0 %v1904
        %1930 = vmatprep.subr.mxu0 0.0
        %1931 = vmatpush1.msra.mxu0 %v1905
        %1932 = vmatprep.subr.mxu0 0.0
        %1933 = vmatpush1.msra.mxu0 %v1906
        %1934 = vmatprep.subr.mxu0 0.0
        %1935 = vmatpush1.msra.mxu0 %v1907
        %1936 = vmatprep.subr.mxu0 0.0
        %1937 = vmatpush1.msra.mxu0 %v1908
        %1938 = vmatprep.subr.mxu0 0.0
        %1939 = vmatpush1.msra.mxu0 %v1909
        %1940 = vmatprep.subr.mxu0 0.0
        %1941 = vmatpush1.msra.mxu0 %v1910
        %1942 = vmatprep.subr.mxu0 0.0
        %1943 = vmatpush1.msra.mxu0 %v1911
        %1944 = vmatprep.subr.mxu0 0.0
        %1945 = vmatpush1.msra.mxu0 %v1912
        %1946 = vmatprep.subr.mxu0 0.0
        %1947 = vmatpush1.msra.mxu0 %v1913
        %1948 = vmatprep.subr.mxu0 0.0
        %1949 = vmatpush1.msra.mxu0 %v1914
        %1950 = vmatprep.subr.mxu0 0.0
        %1951 = vmatpush1.msra.mxu0 %v1915
        %1952 = vmatprep.subr.mxu0 0.0
        %1953 = vmatpush1.msra.mxu0 %v1916
        %1954 = vmatprep.subr.mxu0 0.0
        %1955 = vmatpush1.msra.mxu0 %v1917
        %1956 = vmatprep.subr.mxu0 0.0
        %1957 = vmatpush1.msra.mxu0 %v1918
        %1958 = vmatprep.subr.mxu0 0.0
        %1959 = vmatpush1.msra.mxu0 0.0
        %1960 = vmatprep.subr.mxu0 0.0
        %1961 = vmatpush1.msra.mxu0 0.0
        %1962 = vmatprep.subr.mxu0 0.0
        %1963 = vmatpush1.msra.mxu0 0.0
        %1964 = vmatprep.subr.mxu0 0.0
        %1965 = vmatpush1.msra.mxu0 0.0
        %1966 = vmatprep.subr.mxu0 0.0
        %1967 = vmatpush1.msra.mxu0 0.0
        %1968 = vmatprep.subr.mxu0 0.0
        %1969 = vmatpush1.msra.mxu0 0.0
        %1970 = vmatprep.subr.mxu0 0.0
        %1971 = vmatpush1.msra.mxu0 0.0
        %1972 = vmatprep.subr.mxu0 0.0
        %1973 = vmatpush1.msra.mxu0 0.0
        %1974 = vmatprep.subr.mxu0 0.0
        %1975 = vmatpush1.msra.mxu0 0.0
        %1976 = vmatprep.subr.mxu0 0.0
        %1977 = vmatpush1.msra.mxu0 0.0
        %1978 = vmatprep.subr.mxu0 0.0
        %1979 = vmatpush1.msra.mxu0 0.0
        %1980 = vmatprep.subr.mxu0 0.0
        %1981 = vmatpush1.msra.mxu0 0.0
        %1982 = vmatprep.subr.mxu0 0.0
        %1983 = vmatpush1.msra.mxu0 0.0
        %1984 = vmatprep.subr.mxu0 0.0
        %1985 = vmatpush1.msra.mxu0 0.0
        %1986 = vmatprep.subr.mxu0 0.0
        %1987 = vmatpush1.msra.mxu0 0.0
        %1988 = vmatprep.subr.mxu0 0.0
        %1989 = vmatpush1.msra.mxu0 0.0
        %1990 = vmatprep.mubr.f32.mxu0 0.0
        %1991 = vmatmul.mubr.f32.gmra.mrb[0].mxu0 %v1887
        %v1992 = vpop.f32.mrb[0].mxu0
        %v1993 = vadd.f32 %v1924, %v1992
        %v1994 = vpop.f32.mrb[0].mxu0
        %1995 = vmatprep.mubr.f32.mxu0 0.0
        %1996 = vmatmul.mubr.f32.gmra.mrb[0].mxu0 %v1888
        %v1997 = vpop.f32.mrb[0].mxu0
        %v1998 = vadd.f32 %v1924, %v1997
        %v1999 = vpop.f32.mrb[0].mxu0
        %2000 = vmatprep.mubr.f32.mxu0 0.0
        %2001 = vmatmul.mubr.f32.gmra.mrb[0].mxu0 %v1889
        %v2002 = vpop.f32.mrb[0].mxu0
        %v2003 = vadd.f32 %v1924, %v2002
        %v2004 = vpop.f32.mrb[0].mxu0
        %2005 = vmatprep.mubr.f32.mxu0 0.0
        %2006 = vmatmul.mubr.f32.gmra.mrb[0].mxu0 %v1890
        %v2007 = vpop.f32.mrb[0].mxu0
        %v2008 = vadd.f32 %v1924, %v2007
        %v2009 = vpop.f32.mrb[0].mxu0
        %2010 = vmatprep.mubr.f32.mxu0 0.0
        %2011 = vmatmul.mubr.f32.gmra.mrb[0].mxu0 %v1891
        %v2012 = vpop.f32.mrb[0].mxu0
        %v2013 = vadd.f32 %v1924, %v2012
        %v2014 = vpop.f32.mrb[0].mxu0
        %2015 = vmatprep.mubr.f32.mxu0 0.0
        %2016 = vmatmul.mubr.f32.gmra.mrb[0].mxu0 %v1892
        %v2017 = vpop.f32.mrb[0].mxu0
        %v2018 = vadd.f32 %v1924, %v2017
        %v2019 = vpop.f32.mrb[0].mxu0
        %2020 = vmatprep.mubr.f32.mxu0 0.0
        %2021 = vmatmul.mubr.f32.gmra.mrb[0].mxu0 %v1893
        %v2022 = vpop.f32.mrb[0].mxu0
        %v2023 = vadd.f32 %v1924, %v2022
        %v2024 = vpop.f32.mrb[0].mxu0
        %2025 = vmatprep.mubr.f32.mxu0 0.0
        %2026 = vmatmul.mubr.f32.gmra.mrb[0].mxu0 %v1894
        %v2027 = vpop.f32.mrb[0].mxu0
        %v2028 = vadd.f32 %v1924, %v2027
        %v2029 = vpop.f32.mrb[0].mxu0
        %2030 = vmatprep.mubr.f32.mxu0 0.0
        %2031 = vmatmul.mubr.f32.gmra.mrb[0].mxu0 %v1895
        %v2032 = vpop.f32.mrb[0].mxu0
        %v2033 = vadd.f32 %v1924, %v2032
        %v2034 = vpop.f32.mrb[0].mxu0
        %2035 = vmatprep.mubr.f32.mxu0 0.0
        %2036 = vmatmul.mubr.f32.gmra.mrb[0].mxu0 %v1896
        %v2037 = vpop.f32.mrb[0].mxu0
        %v2038 = vadd.f32 %v1924, %v2037
        %v2039 = vpop.f32.mrb[0].mxu0
        %2040 = vmatprep.mubr.f32.mxu0 0.0
        %2041 = vmatmul.mubr.f32.gmra.mrb[0].mxu0 %v1897
        %v2042 = vpop.f32.mrb[0].mxu0
        %v2043 = vadd.f32 %v1924, %v2042
        %v2044 = vpop.f32.mrb[0].mxu0
        %2045 = vmatprep.mubr.f32.mxu0 0.0
        %2046 = vmatmul.mubr.f32.gmra.mrb[0].mxu0 %v1898
        %v2047 = vpop.f32.mrb[0].mxu0
        %v2048 = vadd.f32 %v1924, %v2047
        %v2049 = vpop.f32.mrb[0].mxu0
        %2050 = vmatprep.mubr.f32.mxu0 0.0
        %2051 = vmatmul.mubr.f32.gmra.mrb[0].mxu0 %v1899
        %v2052 = vpop.f32.mrb[0].mxu0
        %v2053 = vadd.f32 %v1924, %v2052
        %v2054 = vpop.f32.mrb[0].mxu0
        %2055 = vmatprep.mubr.f32.mxu0 0.0
        %2056 = vmatmul.mubr.f32.gmra.mrb[0].mxu0 %v1900
        %v2057 = vpop.f32.mrb[0].mxu0
        %v2058 = vadd.f32 %v1924, %v2057
        %v2059 = vpop.f32.mrb[0].mxu0
        %2060 = vmatprep.mubr.f32.mxu0 0.0
        %2061 = vmatmul.mubr.f32.gmra.mrb[0].mxu0 %v1901
        %v2062 = vpop.f32.mrb[0].mxu0
        %v2063 = vadd.f32 %v1924, %v2062
        %v2064 = vpop.f32.mrb[0].mxu0
        %2065 = vmatprep.mubr.f32.mxu0 0.0
        %2066 = vmatmul.mubr.f32.gmra.mrb[0].mxu0 %v1902
        %v2067 = vpop.f32.mrb[0].mxu0
        %v2068 = vadd.f32 %v1924, %v2067
        %v2069 = vpop.f32.mrb[0].mxu0
        %2070 = vdwg.mxu0
        %2071 = vmax.xlane.f32.xlu0 %v1993
        %v2072 = vpop.xlane.xlu0 %2071
        %2073 = vmax.xlane.f32.xlu0 %v1998
        %v2074 = vpop.xlane.xlu0 %2073
        %2075 = vmax.xlane.f32.xlu0 %v2003
        %v2076 = vpop.xlane.xlu0 %2075
        %2077 = vmax.xlane.f32.xlu0 %v2008
        %v2078 = vpop.xlane.xlu0 %2077
        %2079 = vmax.xlane.f32.xlu0 %v2013
        %v2080 = vpop.xlane.xlu0 %2079
        %2081 = vmax.xlane.f32.xlu0 %v2018
        %v2082 = vpop.xlane.xlu0 %2081
        %2083 = vmax.xlane.f32.xlu0 %v2023
        %v2084 = vpop.xlane.xlu0 %2083
        %2085 = vmax.xlane.f32.xlu0 %v2028
        %v2086 = vpop.xlane.xlu0 %2085
        %2087 = vmax.xlane.f32.xlu0 %v2033
        %v2088 = vpop.xlane.xlu0 %2087
        %2089 = vmax.xlane.f32.xlu0 %v2038
        %v2090 = vpop.xlane.xlu0 %2089
        %2091 = vmax.xlane.f32.xlu0 %v2043
        %v2092 = vpop.xlane.xlu0 %2091
        %2093 = vmax.xlane.f32.xlu0 %v2048
        %v2094 = vpop.xlane.xlu0 %2093
        %2095 = vmax.xlane.f32.xlu0 %v2053
        %v2096 = vpop.xlane.xlu0 %2095
        %2097 = vmax.xlane.f32.xlu0 %v2058
        %v2098 = vpop.xlane.xlu0 %2097
        %2099 = vmax.xlane.f32.xlu0 %v2063
        %v2100 = vpop.xlane.xlu0 %2099
        %2101 = vmax.xlane.f32.xlu0 %v2068
        %v2102 = vpop.xlane.xlu0 %2101
        %v2103 = vsub.f32 %v1993, %v2072
        %v2104 = vsub.f32 %v1998, %v2074
        %v2105 = vsub.f32 %v2003, %v2076
        %v2106 = vsub.f32 %v2008, %v2078
        %v2107 = vsub.f32 %v2013, %v2080
        %v2108 = vsub.f32 %v2018, %v2082
        %v2109 = vsub.f32 %v2023, %v2084
        %v2110 = vsub.f32 %v2028, %v2086
        %v2111 = vsub.f32 %v2033, %v2088
        %v2112 = vsub.f32 %v2038, %v2090
        %v2113 = vsub.f32 %v2043, %v2092
        %v2114 = vsub.f32 %v2048, %v2094
        %v2115 = vsub.f32 %v2053, %v2096
        %v2116 = vsub.f32 %v2058, %v2098
        %v2117 = vsub.f32 %v2063, %v2100
        %v2118 = vsub.f32 %v2068, %v2102
        %v2119 = vmul.f32 %v2103, 1.442695
        %v2120 = vpow.pop %v2119
        %v2121 = vmul.f32 %v2104, 1.442695
        %v2122 = vpow.pop %v2121
        %v2123 = vmul.f32 %v2105, 1.442695
        %v2124 = vpow.pop %v2123
        %v2125 = vmul.f32 %v2106, 1.442695
        %v2126 = vpow.pop %v2125
        %v2127 = vmul.f32 %v2107, 1.442695
        %v2128 = vpow.pop %v2127
        %v2129 = vmul.f32 %v2108, 1.442695
        %v2130 = vpow.pop %v2129
        %v2131 = vmul.f32 %v2109, 1.442695
        %v2132 = vpow.pop %v2131
        %v2133 = vmul.f32 %v2110, 1.442695
        %v2134 = vpow.pop %v2133
        %v2135 = vmul.f32 %v2111, 1.442695
        %v2136 = vpow.pop %v2135
        %v2137 = vmul.f32 %v2112, 1.442695
        %v2138 = vpow.pop %v2137
        %v2139 = vmul.f32 %v2113, 1.442695
        %v2140 = vpow.pop %v2139
        %v2141 = vmul.f32 %v2114, 1.442695
        %v2142 = vpow.pop %v2141
        %v2143 = vmul.f32 %v2115, 1.442695
        %v2144 = vpow.pop %v2143
        %v2145 = vmul.f32 %v2116, 1.442695
        %v2146 = vpow.pop %v2145
        %v2147 = vmul.f32 %v2117, 1.442695
        %v2148 = vpow.pop %v2147
        %v2149 = vmul.f32 %v2118, 1.442695
        %v2150 = vpow.pop %v2149
        %2151 = vadd.xlane.f32.xlu0 %v2120
        %v2152 = vpop.xlane.xlu0 %2151
        %2153 = vadd.xlane.f32.xlu0 %v2122
        %v2154 = vpop.xlane.xlu0 %2153
        %2155 = vadd.xlane.f32.xlu0 %v2124
        %v2156 = vpop.xlane.xlu0 %2155
        %2157 = vadd.xlane.f32.xlu0 %v2126
        %v2158 = vpop.xlane.xlu0 %2157
        %2159 = vadd.xlane.f32.xlu0 %v2128
        %v2160 = vpop.xlane.xlu0 %2159
        %2161 = vadd.xlane.f32.xlu0 %v2130
        %v2162 = vpop.xlane.xlu0 %2161
        %2163 = vadd.xlane.f32.xlu0 %v2132
        %v2164 = vpop.xlane.xlu0 %2163
        %2165 = vadd.xlane.f32.xlu0 %v2134
        %v2166 = vpop.xlane.xlu0 %2165
        %2167 = vadd.xlane.f32.xlu0 %v2136
        %v2168 = vpop.xlane.xlu0 %2167
        %2169 = vadd.xlane.f32.xlu0 %v2138
        %v2170 = vpop.xlane.xlu0 %2169
        %2171 = vadd.xlane.f32.xlu0 %v2140
        %v2172 = vpop.xlane.xlu0 %2171
        %2173 = vadd.xlane.f32.xlu0 %v2142
        %v2174 = vpop.xlane.xlu0 %2173
        %2175 = vadd.xlane.f32.xlu0 %v2144
        %v2176 = vpop.xlane.xlu0 %2175
        %2177 = vadd.xlane.f32.xlu0 %v2146
        %v2178 = vpop.xlane.xlu0 %2177
        %2179 = vadd.xlane.f32.xlu0 %v2148
        %v2180 = vpop.xlane.xlu0 %2179
        %2181 = vadd.xlane.f32.xlu0 %v2150
        %v2182 = vpop.xlane.xlu0 %2181
        %v2183 = vlog2.pop %v2152
        %v2184 = vmul.f32 %v2183, 0.6931472
        %v2185 = vlog2.pop %v2154
        %v2186 = vmul.f32 %v2185, 0.6931472
        %v2187 = vlog2.pop %v2156
        %v2188 = vmul.f32 %v2187, 0.6931472
        %v2189 = vlog2.pop %v2158
        %v2190 = vmul.f32 %v2189, 0.6931472
        %v2191 = vlog2.pop %v2160
        %v2192 = vmul.f32 %v2191, 0.6931472
        %v2193 = vlog2.pop %v2162
        %v2194 = vmul.f32 %v2193, 0.6931472
        %v2195 = vlog2.pop %v2164
        %v2196 = vmul.f32 %v2195, 0.6931472
        %v2197 = vlog2.pop %v2166
        %v2198 = vmul.f32 %v2197, 0.6931472
        %v2199 = vlog2.pop %v2168
        %v2200 = vmul.f32 %v2199, 0.6931472
        %v2201 = vlog2.pop %v2170
        %v2202 = vmul.f32 %v2201, 0.6931472
        %v2203 = vlog2.pop %v2172
        %v2204 = vmul.f32 %v2203, 0.6931472
        %v2205 = vlog2.pop %v2174
        %v2206 = vmul.f32 %v2205, 0.6931472
        %v2207 = vlog2.pop %v2176
        %v2208 = vmul.f32 %v2207, 0.6931472
        %v2209 = vlog2.pop %v2178
        %v2210 = vmul.f32 %v2209, 0.6931472
        %v2211 = vlog2.pop %v2180
        %v2212 = vmul.f32 %v2211, 0.6931472
        %v2213 = vlog2.pop %v2182
        %v2214 = vmul.f32 %v2213, 0.6931472
        %v2215 = vadd.f32 %v2072, %v2184
        %v2216 = vadd.f32 %v2074, %v2186
        %v2217 = vadd.f32 %v2076, %v2188
        %v2218 = vadd.f32 %v2078, %v2190
        %v2219 = vadd.f32 %v2080, %v2192
        %v2220 = vadd.f32 %v2082, %v2194
        %v2221 = vadd.f32 %v2084, %v2196
        %v2222 = vadd.f32 %v2086, %v2198
        %v2223 = vadd.f32 %v2088, %v2200
        %v2224 = vadd.f32 %v2090, %v2202
        %v2225 = vadd.f32 %v2092, %v2204
        %v2226 = vadd.f32 %v2094, %v2206
        %v2227 = vadd.f32 %v2096, %v2208
        %v2228 = vadd.f32 %v2098, %v2210
        %v2229 = vadd.f32 %v2100, %v2212
        %v2230 = vadd.f32 %v2102, %v2214
        %v2231 = vsub.f32 %v1993, %v2215
        %v2232 = vsub.f32 %v1998, %v2216
        %v2233 = vsub.f32 %v2003, %v2217
        %v2234 = vsub.f32 %v2008, %v2218
        %v2235 = vsub.f32 %v2013, %v2219
        %v2236 = vsub.f32 %v2018, %v2220
        %v2237 = vsub.f32 %v2023, %v2221
        %v2238 = vsub.f32 %v2028, %v2222
        %v2239 = vsub.f32 %v2033, %v2223
        %v2240 = vsub.f32 %v2038, %v2224
        %v2241 = vsub.f32 %v2043, %v2225
        %v2242 = vsub.f32 %v2048, %v2226
        %v2243 = vsub.f32 %v2053, %v2227
        %v2244 = vsub.f32 %v2058, %v2228
        %v2245 = vsub.f32 %v2063, %v2229
        %v2246 = vsub.f32 %v2068, %v2230
        %2247 = vst [vmem:[%s233] sm:$0xff] %v2231
        %2248 = vst [vmem:[%s233 + $0x8] sm:$0xff] %v2232
        %2249 = vst [vmem:[%s233 + $0x10] sm:$0xff] %v2233
        %2250 = vst [vmem:[%s233 + $0x18] sm:$0xff] %v2234
        %2251 = vst [vmem:[%s233 + $0x20] sm:$0xff] %v2235
        %2252 = vst [vmem:[%s233 + $0x28] sm:$0xff] %v2236
        %2253 = vst [vmem:[%s233 + $0x30] sm:$0xff] %v2237
        %2254 = vst [vmem:[%s233 + $0x38] sm:$0xff] %v2238
        %2255 = vst [vmem:[%s233 + $0x40] sm:$0xff] %v2239
        %2256 = vst [vmem:[%s233 + $0x48] sm:$0xff] %v2240
        %2257 = vst [vmem:[%s233 + $0x50] sm:$0xff] %v2241
        %2258 = vst [vmem:[%s233 + $0x58] sm:$0xff] %v2242
        %2259 = vst [vmem:[%s233 + $0x60] sm:$0xff] %v2243
        %2260 = vst [vmem:[%s233 + $0x68] sm:$0xff] %v2244
        %2261 = vst [vmem:[%s233 + $0x70] sm:$0xff] %v2245
        %2262 = vst [vmem:[%s233 + $0x78] sm:$0xff] %v2246
        %s2263 = sand.u32 %s138, 1
        %s2264 = scalar_lea.sflag [#allocation4], %s2263
        %s2265 = sand.u32 %s138, 1
        %s2266 = smul.addr %s2265, 128
        %s2267 = scalar_lea.vmem [#allocation5], %s2266
        // Predicated region
        $region45: #{tpu_custom_call.1} parent=39 // pred_check
          %p2268 = pneg %p148
        $region46: #{tpu_custom_call.1} parent=39 // pred_check_branch
          %2270 = sbr.rel (%p2268) target = $region48
        $region47: #{tpu_custom_call.1} parent=39 // pred_region
          %s2271 = smul.u32 16, %s20
          %s2273 = ssub.s32 2048, 2048
          %2274 = vsyncadd %s2264, %s2273
          %s2275 = smul.addr %s2271, 128
          %s2276 = scalar_lea.hbm %s5, %s2275
          %s2277 = sshll.u32 %s2267, 4
          %s2278 = int_to_ptr.vmem [resolvable:$true] %s2277
          %2283 = dma.vmem_to_hbm [thread:$0]  %s2278, 2048, %s2276, %s2264, 128, 128, 8
        $region48: #{tpu_custom_call.1} parent=39 // pred_fallthru
          _
      $region40: #{tpu_custom_call.1} parent=5 // pred_fallthru
        _
      %p2284 = scmp.le.s32.totalorder 2, %s15
      // Predicated region
      $region49: #{tpu_custom_call.1} parent=5 // pred_check
        %p2285 = pneg %p2284
      $region50: #{tpu_custom_call.1} parent=5 // pred_check_branch
        %2287 = sbr.rel (%p2285) target = $region52
      $region51: #{tpu_custom_call.1} parent=5 // pred_region
        %s2288 = ssub.s32 %s15, 2
        // Predicated region
        $region53: #{tpu_custom_call.1} parent=51 // pred_check
          %p2289 = pneg %p154
        $region54: #{tpu_custom_call.1} parent=51 // pred_check_branch
          %2291 = sbr.rel (%p2289) target = $region56
        $region55: #{tpu_custom_call.1} parent=51 // pred_region
          %s2292 = sand.u32 %s139, 1
          %s2293 = scalar_lea.sflag [#allocation4], %s2292
          %s2294 = sand.u32 %s139, 1
          %s2295 = smul.addr %s2294, 128
          %s2296 = scalar_lea.vmem [#allocation5], %s2295
          %2297 = dma.done %s2293, 2048
        $region56: #{tpu_custom_call.1} parent=51 // pred_fallthru
          _
      $region52: #{tpu_custom_call.1} parent=5 // pred_fallthru
        _
    $region6: #{tpu_custom_call.1} parent=1 // loop_footer
      %s19 = sadd.s32 1, %s15
    $region7: #{tpu_custom_call.1} parent=1 // loop_footer_branch
      %14 = sbr.rel target = $region3
    $region8: #{tpu_custom_call.1} parent=1 // loop_exit
      _
    %2298 = vsyncpa [#allocation3], 1
    %s2299 = scalar_lea.sflag [#allocation3], 1
    %2300 = vsyncpa %s2299, 1
    %2301 = vsyncpa [#allocation4], 1
    %s2302 = scalar_lea.sflag [#allocation4], 1
    %2303 = vsyncpa %s2302, 1

</llo_original>
